<compile_context>
chip_gen: v7x
topology: tpu7x:2x2x1
jax: 0.10.0
libtpu: 0.0.40
codegen_flags: <defaults>
</compile_context>

<pallas_src>
import functools

import jax
import jax.numpy as jnp
import numpy as np
from jax.experimental import pallas as pl
from jax.experimental.pallas import tpu as pltpu  # noqa: F401  (TPU backend)

N_PAD = 64    # node dim padded to a multiple of 8 sublanes (MXU-friendly)
F_PAD = 128   # all feature dims padded to one full vreg lane width


def _sage_fused_kernel(adj_ref, x_ref, w_ref, b_ref, o_ref, *, out_feats):
    """Fused 5-layer SAGEConv('gcn') forward.

    adj_ref: [N_PAD, N_PAD] f32   row-normalized A_hat (zero-padded)
    x_ref:   [N_PAD, F_PAD] f32   input features (zero-padded)
    w_ref:   [5, F_PAD, F_PAD] f32  per-layer weights (zero-padded)
    b_ref:   [5, 1, F_PAD] f32      per-layer biases  (zero-padded)
    o_ref:   [N_PAD, F_PAD] f32     log_softmax output (padded)
    """
    a = adj_ref[...]                     # loaded once, reused by all 5 layers
    h = x_ref[...]

    # conv1..conv4: (A_hat @ H) @ W_i + b_i, then ReLU.  Intermediates never
    # touch HBM — they live in vregs / VMEM for the whole kernel.
    for i in range(4):
        agg = jnp.dot(a, h, preferred_element_type=jnp.float32)      # MXU
        h = jnp.dot(agg, w_ref[i], preferred_element_type=jnp.float32) + b_ref[i]
        h = jnp.maximum(h, 0.0)                                       # VPU

    # conv5 + numerically-stable log_softmax over the *valid* feature columns
    # only (padded columns would otherwise add exp(0)=1 to the denominator).
    agg = jnp.dot(a, h, preferred_element_type=jnp.float32)
    logits = jnp.dot(agg, w_ref[4], preferred_element_type=jnp.float32) + b_ref[4]

    col = jax.lax.broadcasted_iota(jnp.int32, logits.shape, 1)
    valid = col < out_feats
    masked = jnp.where(valid, logits, jnp.float32(-1e30))
    m = jnp.max(masked, axis=-1, keepdims=True)
    s = masked - m
    ex = jnp.where(valid, jnp.exp(s), 0.0)
    lse = jnp.log(jnp.sum(ex, axis=-1, keepdims=True))
    o_ref[...] = (s - lse).astype(o_ref.dtype)


def _pad2(arr, rows, cols):
    r, c = arr.shape
    return jnp.pad(arr.astype(jnp.float32), ((0, rows - r), (0, cols - c)))


def sage_forward(adj, x, params):
    """SAGE.forward: conv1..conv4 + relu, conv5 + log_softmax — one pallas_call."""
    n = adj.shape[0]
    out_feats = params["w5"].shape[1]

    adj_p = _pad2(adj, N_PAD, N_PAD)
    x_p = _pad2(x, N_PAD, F_PAD)
    ws = jnp.stack([_pad2(params[f"w{i}"], F_PAD, F_PAD) for i in range(1, 6)])
    bs = jnp.stack([_pad2(params[f"b{i}"], 1, F_PAD) for i in range(1, 6)])

    kernel = functools.partial(_sage_fused_kernel, out_feats=out_feats)

    out_p = pl.pallas_call(
        kernel,
        out_shape=jax.ShapeDtypeStruct((N_PAD, F_PAD), jnp.float32),
        in_specs=[
            pl.BlockSpec((N_PAD, N_PAD), lambda: (0, 0)),
            pl.BlockSpec((N_PAD, F_PAD), lambda: (0, 0)),
            pl.BlockSpec((5, F_PAD, F_PAD), lambda: (0, 0, 0)),
            pl.BlockSpec((5, 1, F_PAD), lambda: (0, 0, 0)),
        ],
        out_specs=pl.BlockSpec((N_PAD, F_PAD), lambda: (0, 0)),
    )(adj_p, x_p, ws, bs)

    # Un-pad: valid nodes and valid classes only.
    return out_p[:n, :out_feats]


def sage_reference(adj, x, params):
    """Pure-JAX reference for correctness checking."""
    h = x
    for i in range(1, 5):
        h = jnp.maximum((adj @ h) @ params[f"w{i}"] + params[f"b{i}"], 0.0)
    h = (adj @ h) @ params["w5"] + params["b5"]
    return jax.nn.log_softmax(h, axis=-1)


def build_normalized_adjacency(n):
    """Deterministic small undirected graph (ring + chords), GCN-normalized.

    A_hat = (A + I) / (in_degree + 1), row-wise — matches DGL SAGEConv 'gcn':
    h_neigh_i = (sum_{j in N(i)} h_j + h_i) / (deg_in(i) + 1).
    """
    a = np.zeros((n, n), dtype=np.float32)
    edges = [(i, (i + 1) % n) for i in range(n)]
    edges += [(0, n // 2), (1, n // 3), (2, (2 * n) // 3), (3, n - 4), (5, n - 7)]
    for u, v in edges:
        if u != v:
            a[u, v] = 1.0
            a[v, u] = 1.0
    deg_in = a.sum(axis=1)  # symmetric graph: in-degree == row sum
    a_hat = (a + np.eye(n, dtype=np.float32)) / (deg_in[:, None] + 1.0)
    return jnp.asarray(a_hat, dtype=jnp.float32)


def init_params(key, in_feats, hid_feats, out_feats):
    """PyTorch-Linear-style init (uniform +/- 1/sqrt(fan_in)).

    W stored as [in, out] (transpose of torch.nn.Linear.weight), b as [1, out].
    """
    dims = [(in_feats, hid_feats), (hid_feats, hid_feats), (hid_feats, hid_feats),
            (hid_feats, hid_feats), (hid_feats, out_feats)]
    params = {}
    for i, (fi, fo) in enumerate(dims, start=1):
        key, kw, kb = jax.random.split(key, 3)
        bound = 1.0 / np.sqrt(fi)
        params[f"w{i}"] = jax.random.uniform(
            kw, (fi, fo), jnp.float32, minval=-bound, maxval=bound)
        params[f"b{i}"] = jax.random.uniform(
            kb, (1, fo), jnp.float32, minval=-bound, maxval=bound)
    return params


if __name__ == "__main__":
    # Karate-club-sized graph: 34 nodes; 7 output classes (kmeans n_clusters=7).
    # TODO(synk): DGL graph building / MyDataset / KMeans labeling are host-side
    # data prep, represented here by a deterministic normalized dense adjacency.
    N = 34
    IN_FEATS, HID_FEATS, OUT_FEATS = 8, 16, 7

    key = jax.random.PRNGKey(0)
    key, kx = jax.random.split(key)
    x = jax.random.normal(kx, (N, IN_FEATS), dtype=jnp.float32)

    adj = build_normalized_adjacency(N)
    params = init_params(key, IN_FEATS, HID_FEATS, OUT_FEATS)

    out = jax.jit(sage_forward)(adj, x, params)
    out = jax.block_until_ready(out)

    assert out.shape == (N, OUT_FEATS)
    assert bool(jnp.all(jnp.isfinite(out)))
    # rows of log_softmax must (log-)sum to ~0
    assert bool(jnp.allclose(jnp.sum(jnp.exp(out), axis=-1), 1.0, atol=1e-4))
    # match the pure-JAX reference
    ref = sage_reference(adj, x, params)
    assert bool(jnp.allclose(out, ref, atol=1e-2, rtol=1e-2))

    print("KERNEL_OK")
</pallas_src>

<mosaic_0001>
module attributes {stable_mosaic.version = 11 : i64} {
  func.func @_sage_fused_kernel(%arg0: memref<64x64xf32, #tpu.memory_space<vmem>>, %arg1: memref<64x128xf32, #tpu.memory_space<vmem>>, %arg2: memref<5x128x128xf32, #tpu.memory_space<vmem>>, %arg3: memref<5x1x128xf32, #tpu.memory_space<vmem>>, %arg4: memref<64x128xf32, #tpu.memory_space<vmem>>) attributes {dimension_semantics = [], scalar_prefetch = 0 : i64, scratch_operands = 0 : i64, tpu.core_type = #tpu.core_type<tc>} {
    %c0 = arith.constant 0 : index
    %c0_0 = arith.constant 0 : index
    %0 = vector.load %arg0[%c0, %c0_0] : memref<64x64xf32, #tpu.memory_space<vmem>>, vector<64x64xf32>
    %c0_1 = arith.constant 0 : index
    %c0_2 = arith.constant 0 : index
    %1 = vector.load %arg1[%c0_1, %c0_2] : memref<64x128xf32, #tpu.memory_space<vmem>>, vector<64x128xf32>
    %cst = arith.constant dense<0.000000e+00> : vector<64x128xf32>
    %2 = tpu.matmul %0, %1, %cst {dimension_numbers = #tpu.dot_dimension_numbers<[1], [0], [0], [1], [0, 0, 1, 1], [], []>} : vector<64x64xf32>, vector<64x128xf32>, vector<64x128xf32> -> vector<64x128xf32>
    %c0_3 = arith.constant 0 : index
    %c0_4 = arith.constant 0 : index
    %c0_5 = arith.constant 0 : index
    %3 = vector.load %arg2[%c0_3, %c0_4, %c0_5] : memref<5x128x128xf32, #tpu.memory_space<vmem>>, vector<1x128x128xf32>
    %4 = vector.shape_cast %3 : vector<1x128x128xf32> to vector<128x128xf32>
    %cst_6 = arith.constant dense<0.000000e+00> : vector<64x128xf32>
    %5 = tpu.matmul %2, %4, %cst_6 {dimension_numbers = #tpu.dot_dimension_numbers<[1], [0], [0], [1], [0, 0, 1, 1], [], []>} : vector<64x128xf32>, vector<128x128xf32>, vector<64x128xf32> -> vector<64x128xf32>
    %c0_7 = arith.constant 0 : index
    %c0_8 = arith.constant 0 : index
    %c0_9 = arith.constant 0 : index
    %6 = vector.load %arg3[%c0_7, %c0_8, %c0_9] : memref<5x1x128xf32, #tpu.memory_space<vmem>>, vector<1x1x128xf32>
    %7 = vector.shape_cast %6 : vector<1x1x128xf32> to vector<1x128xf32>
    %8 = vector.broadcast %7 : vector<1x128xf32> to vector<64x128xf32>
    %9 = arith.addf %5, %8 : vector<64x128xf32>
    %cst_10 = arith.constant 0.000000e+00 : f32
    %10 = vector.broadcast %cst_10 : f32 to vector<64x128xf32>
    %11 = arith.maximumf %9, %10 : vector<64x128xf32>
    %cst_11 = arith.constant dense<0.000000e+00> : vector<64x128xf32>
    %12 = tpu.matmul %0, %11, %cst_11 {dimension_numbers = #tpu.dot_dimension_numbers<[1], [0], [0], [1], [0, 0, 1, 1], [], []>} : vector<64x64xf32>, vector<64x128xf32>, vector<64x128xf32> -> vector<64x128xf32>
    %c1 = arith.constant 1 : index
    %c0_12 = arith.constant 0 : index
    %c0_13 = arith.constant 0 : index
    %13 = vector.load %arg2[%c1, %c0_12, %c0_13] : memref<5x128x128xf32, #tpu.memory_space<vmem>>, vector<1x128x128xf32>
    %14 = vector.shape_cast %13 : vector<1x128x128xf32> to vector<128x128xf32>
    %cst_14 = arith.constant dense<0.000000e+00> : vector<64x128xf32>
    %15 = tpu.matmul %12, %14, %cst_14 {dimension_numbers = #tpu.dot_dimension_numbers<[1], [0], [0], [1], [0, 0, 1, 1], [], []>} : vector<64x128xf32>, vector<128x128xf32>, vector<64x128xf32> -> vector<64x128xf32>
    %c1_15 = arith.constant 1 : index
    %c0_16 = arith.constant 0 : index
    %c0_17 = arith.constant 0 : index
    %16 = vector.load %arg3[%c1_15, %c0_16, %c0_17] : memref<5x1x128xf32, #tpu.memory_space<vmem>>, vector<1x1x128xf32>
    %17 = vector.shape_cast %16 : vector<1x1x128xf32> to vector<1x128xf32>
    %18 = vector.broadcast %17 : vector<1x128xf32> to vector<64x128xf32>
    %19 = arith.addf %15, %18 : vector<64x128xf32>
    %cst_18 = arith.constant 0.000000e+00 : f32
    %20 = vector.broadcast %cst_18 : f32 to vector<64x128xf32>
    %21 = arith.maximumf %19, %20 : vector<64x128xf32>
    %cst_19 = arith.constant dense<0.000000e+00> : vector<64x128xf32>
    %22 = tpu.matmul %0, %21, %cst_19 {dimension_numbers = #tpu.dot_dimension_numbers<[1], [0], [0], [1], [0, 0, 1, 1], [], []>} : vector<64x64xf32>, vector<64x128xf32>, vector<64x128xf32> -> vector<64x128xf32>
    %c2 = arith.constant 2 : index
    %c0_20 = arith.constant 0 : index
    %c0_21 = arith.constant 0 : index
    %23 = vector.load %arg2[%c2, %c0_20, %c0_21] : memref<5x128x128xf32, #tpu.memory_space<vmem>>, vector<1x128x128xf32>
    %24 = vector.shape_cast %23 : vector<1x128x128xf32> to vector<128x128xf32>
    %cst_22 = arith.constant dense<0.000000e+00> : vector<64x128xf32>
    %25 = tpu.matmul %22, %24, %cst_22 {dimension_numbers = #tpu.dot_dimension_numbers<[1], [0], [0], [1], [0, 0, 1, 1], [], []>} : vector<64x128xf32>, vector<128x128xf32>, vector<64x128xf32> -> vector<64x128xf32>
    %c2_23 = arith.constant 2 : index
    %c0_24 = arith.constant 0 : index
    %c0_25 = arith.constant 0 : index
    %26 = vector.load %arg3[%c2_23, %c0_24, %c0_25] : memref<5x1x128xf32, #tpu.memory_space<vmem>>, vector<1x1x128xf32>
    %27 = vector.shape_cast %26 : vector<1x1x128xf32> to vector<1x128xf32>
    %28 = vector.broadcast %27 : vector<1x128xf32> to vector<64x128xf32>
    %29 = arith.addf %25, %28 : vector<64x128xf32>
    %cst_26 = arith.constant 0.000000e+00 : f32
    %30 = vector.broadcast %cst_26 : f32 to vector<64x128xf32>
    %31 = arith.maximumf %29, %30 : vector<64x128xf32>
    %cst_27 = arith.constant dense<0.000000e+00> : vector<64x128xf32>
    %32 = tpu.matmul %0, %31, %cst_27 {dimension_numbers = #tpu.dot_dimension_numbers<[1], [0], [0], [1], [0, 0, 1, 1], [], []>} : vector<64x64xf32>, vector<64x128xf32>, vector<64x128xf32> -> vector<64x128xf32>
    %c3 = arith.constant 3 : index
    %c0_28 = arith.constant 0 : index
    %c0_29 = arith.constant 0 : index
    %33 = vector.load %arg2[%c3, %c0_28, %c0_29] : memref<5x128x128xf32, #tpu.memory_space<vmem>>, vector<1x128x128xf32>
    %34 = vector.shape_cast %33 : vector<1x128x128xf32> to vector<128x128xf32>
    %cst_30 = arith.constant dense<0.000000e+00> : vector<64x128xf32>
    %35 = tpu.matmul %32, %34, %cst_30 {dimension_numbers = #tpu.dot_dimension_numbers<[1], [0], [0], [1], [0, 0, 1, 1], [], []>} : vector<64x128xf32>, vector<128x128xf32>, vector<64x128xf32> -> vector<64x128xf32>
    %c3_31 = arith.constant 3 : index
    %c0_32 = arith.constant 0 : index
    %c0_33 = arith.constant 0 : index
    %36 = vector.load %arg3[%c3_31, %c0_32, %c0_33] : memref<5x1x128xf32, #tpu.memory_space<vmem>>, vector<1x1x128xf32>
    %37 = vector.shape_cast %36 : vector<1x1x128xf32> to vector<1x128xf32>
    %38 = vector.broadcast %37 : vector<1x128xf32> to vector<64x128xf32>
    %39 = arith.addf %35, %38 : vector<64x128xf32>
    %cst_34 = arith.constant 0.000000e+00 : f32
    %40 = vector.broadcast %cst_34 : f32 to vector<64x128xf32>
    %41 = arith.maximumf %39, %40 : vector<64x128xf32>
    %cst_35 = arith.constant dense<0.000000e+00> : vector<64x128xf32>
    %42 = tpu.matmul %0, %41, %cst_35 {dimension_numbers = #tpu.dot_dimension_numbers<[1], [0], [0], [1], [0, 0, 1, 1], [], []>} : vector<64x64xf32>, vector<64x128xf32>, vector<64x128xf32> -> vector<64x128xf32>
    %c4 = arith.constant 4 : index
    %c0_36 = arith.constant 0 : index
    %c0_37 = arith.constant 0 : index
    %43 = vector.load %arg2[%c4, %c0_36, %c0_37] : memref<5x128x128xf32, #tpu.memory_space<vmem>>, vector<1x128x128xf32>
    %44 = vector.shape_cast %43 : vector<1x128x128xf32> to vector<128x128xf32>
    %cst_38 = arith.constant dense<0.000000e+00> : vector<64x128xf32>
    %45 = tpu.matmul %42, %44, %cst_38 {dimension_numbers = #tpu.dot_dimension_numbers<[1], [0], [0], [1], [0, 0, 1, 1], [], []>} : vector<64x128xf32>, vector<128x128xf32>, vector<64x128xf32> -> vector<64x128xf32>
    %c4_39 = arith.constant 4 : index
    %c0_40 = arith.constant 0 : index
    %c0_41 = arith.constant 0 : index
    %46 = vector.load %arg3[%c4_39, %c0_40, %c0_41] : memref<5x1x128xf32, #tpu.memory_space<vmem>>, vector<1x1x128xf32>
    %47 = vector.shape_cast %46 : vector<1x1x128xf32> to vector<1x128xf32>
    %48 = vector.broadcast %47 : vector<1x128xf32> to vector<64x128xf32>
    %49 = arith.addf %45, %48 : vector<64x128xf32>
    %50 = tpu.iota {dimensions = array<i32: 1>} : vector<64x128xi32>
    %c7_i32 = arith.constant 7 : i32
    %51 = vector.broadcast %c7_i32 : i32 to vector<64x128xi32>
    %52 = arith.cmpi slt, %50, %51 : vector<64x128xi32>
    %cst_42 = arith.constant -1.000000e+30 : f32
    %53 = vector.broadcast %cst_42 : f32 to vector<64x128xf32>
    %54 = arith.select %52, %49, %53 : vector<64x128xi1>, vector<64x128xf32>
    %cst_43 = arith.constant dense<0xFF800000> : vector<64xf32>
    %55 = vector.multi_reduction <maximumf>, %54, %cst_43 [1] : vector<64x128xf32> to vector<64xf32>
    %56 = vector.shape_cast %55 : vector<64xf32> to vector<64x1xf32>
    %57 = vector.broadcast %56 : vector<64x1xf32> to vector<64x128xf32>
    %58 = arith.subf %54, %57 : vector<64x128xf32>
    %59 = math.exp %58 : vector<64x128xf32>
    %cst_44 = arith.constant 0.000000e+00 : f32
    %60 = vector.broadcast %cst_44 : f32 to vector<64x128xf32>
    %61 = arith.select %52, %59, %60 : vector<64x128xi1>, vector<64x128xf32>
    %cst_45 = arith.constant dense<0.000000e+00> : vector<64xf32>
    %62 = vector.multi_reduction <add>, %61, %cst_45 [1] : vector<64x128xf32> to vector<64xf32>
    %63 = vector.shape_cast %62 : vector<64xf32> to vector<64x1xf32>
    %64 = math.log %63 : vector<64x1xf32>
    %65 = vector.broadcast %64 : vector<64x1xf32> to vector<64x128xf32>
    %66 = arith.subf %58, %65 : vector<64x128xf32>
    %c0_46 = arith.constant 0 : index
    %c0_47 = arith.constant 0 : index
    %67 = vector.load %arg4[%c0_46, %c0_47] : memref<64x128xf32, #tpu.memory_space<vmem>>, vector<64x128xf32>
    tpu.vector_store %arg4[%c0_46, %c0_47], %66 {strides = array<i32>} : memref<64x128xf32, #tpu.memory_space<vmem>>, vector<64x128xf32>,
    return
  }
}

</mosaic_0001>

<llo_original>
// kernel: sage_forward.1
$region0: #{sage_forward.1}
  #allocation0 [shape = 'u32[]', space=smem, size = 0x4, offset = 0x4, fixed_abs, tag = 'smem constant byte address 0x4 - core index']
  #allocation1 [shape = 'u32[144,128]{1,0:T(1,128)}', space=vmem, size = 0x12000, scoped, tag = 'internal scratch']
  %s0 = inlined_call_operand.vmem [shape: f32[64,64], index: 0, kind: input, shape index: {}]
  %s1 = inlined_call_operand.vmem [shape: f32[64,128], index: 1, kind: input, shape index: {}]
  %s2 = inlined_call_operand.vmem [shape: f32[5,128,128], index: 2, kind: input, shape index: {}]
  %s3 = inlined_call_operand.vmem [shape: f32[5,1,128], index: 3, kind: input, shape index: {}]
  %s4 = inlined_call_operand.vmem [shape: f32[64,128], index: 4, kind: output, shape index: {}]
  %s5 = sld [smem:[#allocation0]]
  $region26: #{sage_forward.1} parent=0
    _
  %s7 = ssub.s32 1, %s5
  %s8 = scalar_select 0, %s7, %s5
  // Predicated region
  $region2: #{sage_forward.1} parent=0 // pred_check
    _
  $region3: #{sage_forward.1} parent=0 // pred_check_branch
    %10 = sbr.rel (0) target = $region5
  $region4: #{sage_forward.1} parent=0 // pred_region
    _
  $region5: #{sage_forward.1} parent=0 // pred_fallthru
    _
  // Predicated region
  $region6: #{sage_forward.1} parent=0 // pred_check
    _
  $region7: #{sage_forward.1} parent=0 // pred_check_branch
    %12 = sbr.rel (0) target = $region9
  $region8: #{sage_forward.1} parent=0 // pred_region
    _
  $region9: #{sage_forward.1} parent=0 // pred_fallthru
    _
  // Predicated region
  $region10: #{sage_forward.1} parent=0 // pred_check
    _
  $region11: #{sage_forward.1} parent=0 // pred_check_branch
    %14 = sbr.rel (0) target = $region13
  $region12: #{sage_forward.1} parent=0 // pred_region
    _
  $region13: #{sage_forward.1} parent=0 // pred_fallthru
    _
  // Predicated region
  $region14: #{sage_forward.1} parent=0 // pred_check
    _
  $region15: #{sage_forward.1} parent=0 // pred_check_branch
    %16 = sbr.rel (0) target = $region17
  $region16: #{sage_forward.1} parent=0 // pred_region
    _
  $region17: #{sage_forward.1} parent=0 // pred_fallthru
    _
  %v17 = vld [vmem:[%s0] sm:$0xff]
  %v18 = vld [vmem:[%s0 + $0x8] sm:$0xff]
  %v19 = vld [vmem:[%s0 + $0x10] sm:$0xff]
  %v20 = vld [vmem:[%s0 + $0x18] sm:$0xff]
  %v21 = vld [vmem:[%s0 + $0x20] sm:$0xff]
  %v22 = vld [vmem:[%s0 + $0x28] sm:$0xff]
  %v23 = vld [vmem:[%s0 + $0x30] sm:$0xff]
  %v24 = vld [vmem:[%s0 + $0x38] sm:$0xff]
  %v25 = vld [vmem:[%s1] sm:$0xff]
  %v26 = vld [vmem:[%s1 + $0x8] sm:$0xff]
  %v27 = vld [vmem:[%s1 + $0x10] sm:$0xff]
  %v28 = vld [vmem:[%s1 + $0x18] sm:$0xff]
  %v29 = vld [vmem:[%s1 + $0x20] sm:$0xff]
  %v30 = vld [vmem:[%s1 + $0x28] sm:$0xff]
  %v31 = vld [vmem:[%s1 + $0x30] sm:$0xff]
  %v32 = vld [vmem:[%s1 + $0x38] sm:$0xff]
  %vm33 = vcmask 523264
  %v35 = vsel %vm33, %v17, 0
  %v38 = vsel %vm33, %v18, 0
  %v41 = vsel %vm33, %v19, 0
  %v44 = vsel %vm33, %v20, 0
  %v47 = vsel %vm33, %v21, 0
  %v50 = vsel %vm33, %v22, 0
  %v53 = vsel %vm33, %v23, 0
  %v56 = vsel %vm33, %v24, 0
  %58 = vmatprep.subr.mxu0 0.0
  %59 = vmatpush1.msra.mxu0 %v25
  %60 = vmatprep.subr.mxu0 0.0
  %61 = vmatpush1.msra.mxu0 %v26
  %62 = vmatprep.subr.mxu0 0.0
  %63 = vmatpush1.msra.mxu0 %v27
  %64 = vmatprep.subr.mxu0 0.0
  %65 = vmatpush1.msra.mxu0 %v28
  %66 = vmatprep.subr.mxu0 0.0
  %67 = vmatpush1.msra.mxu0 %v29
  %68 = vmatprep.subr.mxu0 0.0
  %69 = vmatpush1.msra.mxu0 %v30
  %70 = vmatprep.subr.mxu0 0.0
  %71 = vmatpush1.msra.mxu0 %v31
  %72 = vmatprep.subr.mxu0 0.0
  %73 = vmatpush1.msra.mxu0 %v32
  %74 = vmatprep.subr.mxu0 0.0
  %75 = vmatpush1.msra.mxu0 0.0
  %76 = vmatprep.subr.mxu0 0.0
  %77 = vmatpush1.msra.mxu0 0.0
  %78 = vmatprep.subr.mxu0 0.0
  %79 = vmatpush1.msra.mxu0 0.0
  %80 = vmatprep.subr.mxu0 0.0
  %81 = vmatpush1.msra.mxu0 0.0
  %82 = vmatprep.subr.mxu0 0.0
  %83 = vmatpush1.msra.mxu0 0.0
  %84 = vmatprep.subr.mxu0 0.0
  %85 = vmatpush1.msra.mxu0 0.0
  %86 = vmatprep.subr.mxu0 0.0
  %87 = vmatpush1.msra.mxu0 0.0
  %88 = vmatprep.subr.mxu0 0.0
  %89 = vmatpush1.msra.mxu0 0.0
  %90 = vmatprep.subr.mxu0 0.0
  %91 = vmatpush1.msra.mxu0 0.0
  %92 = vmatprep.subr.mxu0 0.0
  %93 = vmatpush1.msra.mxu0 0.0
  %94 = vmatprep.subr.mxu0 0.0
  %95 = vmatpush1.msra.mxu0 0.0
  %96 = vmatprep.subr.mxu0 0.0
  %97 = vmatpush1.msra.mxu0 0.0
  %98 = vmatprep.subr.mxu0 0.0
  %99 = vmatpush1.msra.mxu0 0.0
  %100 = vmatprep.subr.mxu0 0.0
  %101 = vmatpush1.msra.mxu0 0.0
  %102 = vmatprep.subr.mxu0 0.0
  %103 = vmatpush1.msra.mxu0 0.0
  %104 = vmatprep.subr.mxu0 0.0
  %105 = vmatpush1.msra.mxu0 0.0
  %106 = vmatprep.subr.mxu0 0.0
  %107 = vmatpush1.msra.mxu0 0.0
  %108 = vmatprep.subr.mxu0 0.0
  %109 = vmatpush1.msra.mxu0 0.0
  %110 = vmatprep.subr.mxu0 0.0
  %111 = vmatpush1.msra.mxu0 0.0
  %112 = vmatprep.subr.mxu0 0.0
  %113 = vmatpush1.msra.mxu0 0.0
  %114 = vmatprep.subr.mxu0 0.0
  %115 = vmatpush1.msra.mxu0 0.0
  %116 = vmatprep.subr.mxu0 0.0
  %117 = vmatpush1.msra.mxu0 0.0
  %118 = vmatprep.subr.mxu0 0.0
  %119 = vmatpush1.msra.mxu0 0.0
  %120 = vmatprep.subr.mxu0 0.0
  %121 = vmatpush1.msra.mxu0 0.0
  %122 = vmatprep.mubr.f32.mxu0 0.0
  %123 = vmatmul.mubr.f32.gmra.mrb[0].mxu0 %v35
  %v124 = vpop.f32.mrb[0].mxu0
  %v125 = vadd.f32 0.0, %v124
  %v126 = vpop.f32.mrb[0].mxu0
  %127 = vmatprep.mubr.f32.mxu0 0.0
  %128 = vmatmul.mubr.f32.gmra.mrb[0].mxu0 %v38
  %v129 = vpop.f32.mrb[0].mxu0
  %v130 = vadd.f32 0.0, %v129
  %v131 = vpop.f32.mrb[0].mxu0
  %132 = vmatprep.mubr.f32.mxu0 0.0
  %133 = vmatmul.mubr.f32.gmra.mrb[0].mxu0 %v41
  %v134 = vpop.f32.mrb[0].mxu0
  %v135 = vadd.f32 0.0, %v134
  %v136 = vpop.f32.mrb[0].mxu0
  %137 = vmatprep.mubr.f32.mxu0 0.0
  %138 = vmatmul.mubr.f32.gmra.mrb[0].mxu0 %v44
  %v139 = vpop.f32.mrb[0].mxu0
  %v140 = vadd.f32 0.0, %v139
  %v141 = vpop.f32.mrb[0].mxu0
  %142 = vmatprep.mubr.f32.mxu0 0.0
  %143 = vmatmul.mubr.f32.gmra.mrb[0].mxu0 %v47
  %v144 = vpop.f32.mrb[0].mxu0
  %v145 = vadd.f32 0.0, %v144
  %v146 = vpop.f32.mrb[0].mxu0
  %147 = vmatprep.mubr.f32.mxu0 0.0
  %148 = vmatmul.mubr.f32.gmra.mrb[0].mxu0 %v50
  %v149 = vpop.f32.mrb[0].mxu0
  %v150 = vadd.f32 0.0, %v149
  %v151 = vpop.f32.mrb[0].mxu0
  %152 = vmatprep.mubr.f32.mxu0 0.0
  %153 = vmatmul.mubr.f32.gmra.mrb[0].mxu0 %v53
  %v154 = vpop.f32.mrb[0].mxu0
  %v155 = vadd.f32 0.0, %v154
  %v156 = vpop.f32.mrb[0].mxu0
  %157 = vmatprep.mubr.f32.mxu0 0.0
  %158 = vmatmul.mubr.f32.gmra.mrb[0].mxu0 %v56
  %v159 = vpop.f32.mrb[0].mxu0
  %v160 = vadd.f32 0.0, %v159
  %v161 = vpop.f32.mrb[0].mxu0
  %162 = vdwg.mxu0
  %v163 = vld [vmem:[%s2] sm:$0xff]
  %v164 = vld [vmem:[%s2 + $0x8] sm:$0xff]
  %v165 = vld [vmem:[%s2 + $0x10] sm:$0xff]
  %v166 = vld [vmem:[%s2 + $0x18] sm:$0xff]
  %v167 = vld [vmem:[%s2 + $0x20] sm:$0xff]
  %v168 = vld [vmem:[%s2 + $0x28] sm:$0xff]
  %v169 = vld [vmem:[%s2 + $0x30] sm:$0xff]
  %v170 = vld [vmem:[%s2 + $0x38] sm:$0xff]
  %v171 = vld [vmem:[%s2 + $0x40] sm:$0xff]
  %v172 = vld [vmem:[%s2 + $0x48] sm:$0xff]
  %v173 = vld [vmem:[%s2 + $0x50] sm:$0xff]
  %v174 = vld [vmem:[%s2 + $0x58] sm:$0xff]
  %v175 = vld [vmem:[%s2 + $0x60] sm:$0xff]
  %v176 = vld [vmem:[%s2 + $0x68] sm:$0xff]
  %v177 = vld [vmem:[%s2 + $0x70] sm:$0xff]
  %v178 = vld [vmem:[%s2 + $0x78] sm:$0xff]
  %v179 = vld [vmem:[%s3] sm:$0x1]
  %v181 = vlaneseq
  %v182 = vshrl.u32 %v181, 7
  %v183 = vsub.s32 0, %v182
  %v184 = vrot.slane %v179, %v183
  %186 = vmatprep.subr.mxu0 0.0
  %187 = vmatpush1.msra.mxu0 %v163
  %188 = vmatprep.subr.mxu0 0.0
  %189 = vmatpush1.msra.mxu0 %v164
  %190 = vmatprep.subr.mxu0 0.0
  %191 = vmatpush1.msra.mxu0 %v165
  %192 = vmatprep.subr.mxu0 0.0
  %193 = vmatpush1.msra.mxu0 %v166
  %194 = vmatprep.subr.mxu0 0.0
  %195 = vmatpush1.msra.mxu0 %v167
  %196 = vmatprep.subr.mxu0 0.0
  %197 = vmatpush1.msra.mxu0 %v168
  %198 = vmatprep.subr.mxu0 0.0
  %199 = vmatpush1.msra.mxu0 %v169
  %200 = vmatprep.subr.mxu0 0.0
  %201 = vmatpush1.msra.mxu0 %v170
  %202 = vmatprep.subr.mxu0 0.0
  %203 = vmatpush1.msra.mxu0 %v171
  %204 = vmatprep.subr.mxu0 0.0
  %205 = vmatpush1.msra.mxu0 %v172
  %206 = vmatprep.subr.mxu0 0.0
  %207 = vmatpush1.msra.mxu0 %v173
  %208 = vmatprep.subr.mxu0 0.0
  %209 = vmatpush1.msra.mxu0 %v174
  %210 = vmatprep.subr.mxu0 0.0
  %211 = vmatpush1.msra.mxu0 %v175
  %212 = vmatprep.subr.mxu0 0.0
  %213 = vmatpush1.msra.mxu0 %v176
  %214 = vmatprep.subr.mxu0 0.0
  %215 = vmatpush1.msra.mxu0 %v177
  %216 = vmatprep.subr.mxu0 0.0
  %217 = vmatpush1.msra.mxu0 %v178
  %218 = vmatprep.subr.mxu0 0.0
  %219 = vmatpush1.msra.mxu0 0.0
  %220 = vmatprep.subr.mxu0 0.0
  %221 = vmatpush1.msra.mxu0 0.0
  %222 = vmatprep.subr.mxu0 0.0
  %223 = vmatpush1.msra.mxu0 0.0
  %224 = vmatprep.subr.mxu0 0.0
  %225 = vmatpush1.msra.mxu0 0.0
  %226 = vmatprep.subr.mxu0 0.0
  %227 = vmatpush1.msra.mxu0 0.0
  %228 = vmatprep.subr.mxu0 0.0
  %229 = vmatpush1.msra.mxu0 0.0
  %230 = vmatprep.subr.mxu0 0.0
  %231 = vmatpush1.msra.mxu0 0.0
  %232 = vmatprep.subr.mxu0 0.0
  %233 = vmatpush1.msra.mxu0 0.0
  %234 = vmatprep.subr.mxu0 0.0
  %235 = vmatpush1.msra.mxu0 0.0
  %236 = vmatprep.subr.mxu0 0.0
  %237 = vmatpush1.msra.mxu0 0.0
  %238 = vmatprep.subr.mxu0 0.0
  %239 = vmatpush1.msra.mxu0 0.0
  %240 = vmatprep.subr.mxu0 0.0
  %241 = vmatpush1.msra.mxu0 0.0
  %242 = vmatprep.subr.mxu0 0.0
  %243 = vmatpush1.msra.mxu0 0.0
  %244 = vmatprep.subr.mxu0 0.0
  %245 = vmatpush1.msra.mxu0 0.0
  %246 = vmatprep.subr.mxu0 0.0
  %247 = vmatpush1.msra.mxu0 0.0
  %248 = vmatprep.subr.mxu0 0.0
  %249 = vmatpush1.msra.mxu0 0.0
  %250 = vmatprep.mubr.f32.mxu0 0.0
  %251 = vmatmul.mubr.f32.gmra.mrb[0].mxu0 %v125
  %v252 = vpop.f32.mrb[0].mxu0
  %v253 = vadd.f32 %v184, %v252
  %v254 = vpop.f32.mrb[0].mxu0
  %255 = vmatprep.mubr.f32.mxu0 0.0
  %256 = vmatmul.mubr.f32.gmra.mrb[0].mxu0 %v130
  %v257 = vpop.f32.mrb[0].mxu0
  %v258 = vadd.f32 %v184, %v257
  %v259 = vpop.f32.mrb[0].mxu0
  %260 = vmatprep.mubr.f32.mxu0 0.0
  %261 = vmatmul.mubr.f32.gmra.mrb[0].mxu0 %v135
  %v262 = vpop.f32.mrb[0].mxu0
  %v263 = vadd.f32 %v184, %v262
  %v264 = vpop.f32.mrb[0].mxu0
  %265 = vmatprep.mubr.f32.mxu0 0.0
  %266 = vmatmul.mubr.f32.gmra.mrb[0].mxu0 %v140
  %v267 = vpop.f32.mrb[0].mxu0
  %v268 = vadd.f32 %v184, %v267
  %v269 = vpop.f32.mrb[0].mxu0
  %270 = vmatprep.mubr.f32.mxu0 0.0
  %271 = vmatmul.mubr.f32.gmra.mrb[0].mxu0 %v145
  %v272 = vpop.f32.mrb[0].mxu0
  %v273 = vadd.f32 %v184, %v272
  %v274 = vpop.f32.mrb[0].mxu0
  %275 = vmatprep.mubr.f32.mxu0 0.0
  %276 = vmatmul.mubr.f32.gmra.mrb[0].mxu0 %v150
  %v277 = vpop.f32.mrb[0].mxu0
  %v278 = vadd.f32 %v184, %v277
  %v279 = vpop.f32.mrb[0].mxu0
  %280 = vmatprep.mubr.f32.mxu0 0.0
  %281 = vmatmul.mubr.f32.gmra.mrb[0].mxu0 %v155
  %v282 = vpop.f32.mrb[0].mxu0
  %v283 = vadd.f32 %v184, %v282
  %v284 = vpop.f32.mrb[0].mxu0
  %285 = vmatprep.mubr.f32.mxu0 0.0
  %286 = vmatmul.mubr.f32.gmra.mrb[0].mxu0 %v160
  %v287 = vpop.f32.mrb[0].mxu0
  %v288 = vadd.f32 %v184, %v287
  %v289 = vpop.f32.mrb[0].mxu0
  %290 = vdwg.mxu0
  %v291 = vmax.f32 %v253, 0.0
  %v292 = vmax.f32 %v258, 0.0
  %v293 = vmax.f32 %v263, 0.0
  %v294 = vmax.f32 %v268, 0.0
  %v295 = vmax.f32 %v273, 0.0
  %v296 = vmax.f32 %v278, 0.0
  %v297 = vmax.f32 %v283, 0.0
  %v298 = vmax.f32 %v288, 0.0
  %299 = vmatprep.subr.mxu0 0.0
  %300 = vmatpush1.msra.mxu0 %v291
  %301 = vmatprep.subr.mxu0 0.0
  %302 = vmatpush1.msra.mxu0 %v292
  %303 = vmatprep.subr.mxu0 0.0
  %304 = vmatpush1.msra.mxu0 %v293
  %305 = vmatprep.subr.mxu0 0.0
  %306 = vmatpush1.msra.mxu0 %v294
  %307 = vmatprep.subr.mxu0 0.0
  %308 = vmatpush1.msra.mxu0 %v295
  %309 = vmatprep.subr.mxu0 0.0
  %310 = vmatpush1.msra.mxu0 %v296
  %311 = vmatprep.subr.mxu0 0.0
  %312 = vmatpush1.msra.mxu0 %v297
  %313 = vmatprep.subr.mxu0 0.0
  %314 = vmatpush1.msra.mxu0 %v298
  %315 = vmatprep.subr.mxu0 0.0
  %316 = vmatpush1.msra.mxu0 0.0
  %317 = vmatprep.subr.mxu0 0.0
  %318 = vmatpush1.msra.mxu0 0.0
  %319 = vmatprep.subr.mxu0 0.0
  %320 = vmatpush1.msra.mxu0 0.0
  %321 = vmatprep.subr.mxu0 0.0
  %322 = vmatpush1.msra.mxu0 0.0
  %323 = vmatprep.subr.mxu0 0.0
  %324 = vmatpush1.msra.mxu0 0.0
  %325 = vmatprep.subr.mxu0 0.0
  %326 = vmatpush1.msra.mxu0 0.0
  %327 = vmatprep.subr.mxu0 0.0
  %328 = vmatpush1.msra.mxu0 0.0
  %329 = vmatprep.subr.mxu0 0.0
  %330 = vmatpush1.msra.mxu0 0.0
  %331 = vmatprep.subr.mxu0 0.0
  %332 = vmatpush1.msra.mxu0 0.0
  %333 = vmatprep.subr.mxu0 0.0
  %334 = vmatpush1.msra.mxu0 0.0
  %335 = vmatprep.subr.mxu0 0.0
  %336 = vmatpush1.msra.mxu0 0.0
  %337 = vmatprep.subr.mxu0 0.0
  %338 = vmatpush1.msra.mxu0 0.0
  %339 = vmatprep.subr.mxu0 0.0
  %340 = vmatpush1.msra.mxu0 0.0
  %341 = vmatprep.subr.mxu0 0.0
  %342 = vmatpush1.msra.mxu0 0.0
  %343 = vmatprep.subr.mxu0 0.0
  %344 = vmatpush1.msra.mxu0 0.0
  %345 = vmatprep.subr.mxu0 0.0
  %346 = vmatpush1.msra.mxu0 0.0
  %347 = vmatprep.subr.mxu0 0.0
  %348 = vmatpush1.msra.mxu0 0.0
  %349 = vmatprep.subr.mxu0 0.0
  %350 = vmatpush1.msra.mxu0 0.0
  %351 = vmatprep.subr.mxu0 0.0
  %352 = vmatpush1.msra.mxu0 0.0
  %353 = vmatprep.subr.mxu0 0.0
  %354 = vmatpush1.msra.mxu0 0.0
  %355 = vmatprep.subr.mxu0 0.0
  %356 = vmatpush1.msra.mxu0 0.0
  %357 = vmatprep.subr.mxu0 0.0
  %358 = vmatpush1.msra.mxu0 0.0
  %359 = vmatprep.subr.mxu0 0.0
  %360 = vmatpush1.msra.mxu0 0.0
  %361 = vmatprep.subr.mxu0 0.0
  %362 = vmatpush1.msra.mxu0 0.0
  %363 = vmatprep.mubr.f32.mxu0 0.0
  %364 = vmatmul.mubr.f32.gmra.mrb[0].mxu0 %v35
  %v365 = vpop.f32.mrb[0].mxu0
  %v366 = vadd.f32 0.0, %v365
  %v367 = vpop.f32.mrb[0].mxu0
  %368 = vmatprep.mubr.f32.mxu0 0.0
  %369 = vmatmul.mubr.f32.gmra.mrb[0].mxu0 %v38
  %v370 = vpop.f32.mrb[0].mxu0
  %v371 = vadd.f32 0.0, %v370
  %v372 = vpop.f32.mrb[0].mxu0
  %373 = vmatprep.mubr.f32.mxu0 0.0
  %374 = vmatmul.mubr.f32.gmra.mrb[0].mxu0 %v41
  %v375 = vpop.f32.mrb[0].mxu0
  %v376 = vadd.f32 0.0, %v375
  %v377 = vpop.f32.mrb[0].mxu0
  %378 = vmatprep.mubr.f32.mxu0 0.0
  %379 = vmatmul.mubr.f32.gmra.mrb[0].mxu0 %v44
  %v380 = vpop.f32.mrb[0].mxu0
  %v381 = vadd.f32 0.0, %v380
  %v382 = vpop.f32.mrb[0].mxu0
  %383 = vmatprep.mubr.f32.mxu0 0.0
  %384 = vmatmul.mubr.f32.gmra.mrb[0].mxu0 %v47
  %v385 = vpop.f32.mrb[0].mxu0
  %v386 = vadd.f32 0.0, %v385
  %v387 = vpop.f32.mrb[0].mxu0
  %388 = vmatprep.mubr.f32.mxu0 0.0
  %389 = vmatmul.mubr.f32.gmra.mrb[0].mxu0 %v50
  %v390 = vpop.f32.mrb[0].mxu0
  %v391 = vadd.f32 0.0, %v390
  %v392 = vpop.f32.mrb[0].mxu0
  %393 = vmatprep.mubr.f32.mxu0 0.0
  %394 = vmatmul.mubr.f32.gmra.mrb[0].mxu0 %v53
  %v395 = vpop.f32.mrb[0].mxu0
  %v396 = vadd.f32 0.0, %v395
  %v397 = vpop.f32.mrb[0].mxu0
  %398 = vmatprep.mubr.f32.mxu0 0.0
  %399 = vmatmul.mubr.f32.gmra.mrb[0].mxu0 %v56
  %v400 = vpop.f32.mrb[0].mxu0
  %v401 = vadd.f32 0.0, %v400
  %v402 = vpop.f32.mrb[0].mxu0
  %403 = vdwg.mxu0
  %s404 = scalar_lea.vmem %s2, 128
  %v405 = vld [vmem:[%s404] sm:$0xff]
  %v406 = vld [vmem:[%s404 + $0x8] sm:$0xff]
  %v407 = vld [vmem:[%s404 + $0x10] sm:$0xff]
  %v408 = vld [vmem:[%s404 + $0x18] sm:$0xff]
  %v409 = vld [vmem:[%s404 + $0x20] sm:$0xff]
  %v410 = vld [vmem:[%s404 + $0x28] sm:$0xff]
  %v411 = vld [vmem:[%s404 + $0x30] sm:$0xff]
  %v412 = vld [vmem:[%s404 + $0x38] sm:$0xff]
  %v413 = vld [vmem:[%s404 + $0x40] sm:$0xff]
  %v414 = vld [vmem:[%s404 + $0x48] sm:$0xff]
  %v415 = vld [vmem:[%s404 + $0x50] sm:$0xff]
  %v416 = vld [vmem:[%s404 + $0x58] sm:$0xff]
  %v417 = vld [vmem:[%s404 + $0x60] sm:$0xff]
  %v418 = vld [vmem:[%s404 + $0x68] sm:$0xff]
  %v419 = vld [vmem:[%s404 + $0x70] sm:$0xff]
  %v420 = vld [vmem:[%s404 + $0x78] sm:$0xff]
  %s421 = scalar_lea.vmem %s3, 1
  %v422 = vld [vmem:[%s421] sm:$0x1]
  %v424 = vlaneseq
  %v425 = vshrl.u32 %v424, 7
  %v426 = vsub.s32 0, %v425
  %v427 = vrot.slane %v422, %v426
  %429 = vmatprep.subr.mxu0 0.0
  %430 = vmatpush1.msra.mxu0 %v405
  %431 = vmatprep.subr.mxu0 0.0
  %432 = vmatpush1.msra.mxu0 %v406
  %433 = vmatprep.subr.mxu0 0.0
  %434 = vmatpush1.msra.mxu0 %v407
  %435 = vmatprep.subr.mxu0 0.0
  %436 = vmatpush1.msra.mxu0 %v408
  %437 = vmatprep.subr.mxu0 0.0
  %438 = vmatpush1.msra.mxu0 %v409
  %439 = vmatprep.subr.mxu0 0.0
  %440 = vmatpush1.msra.mxu0 %v410
  %441 = vmatprep.subr.mxu0 0.0
  %442 = vmatpush1.msra.mxu0 %v411
  %443 = vmatprep.subr.mxu0 0.0
  %444 = vmatpush1.msra.mxu0 %v412
  %445 = vmatprep.subr.mxu0 0.0
  %446 = vmatpush1.msra.mxu0 %v413
  %447 = vmatprep.subr.mxu0 0.0
  %448 = vmatpush1.msra.mxu0 %v414
  %449 = vmatprep.subr.mxu0 0.0
  %450 = vmatpush1.msra.mxu0 %v415
  %451 = vmatprep.subr.mxu0 0.0
  %452 = vmatpush1.msra.mxu0 %v416
  %453 = vmatprep.subr.mxu0 0.0
  %454 = vmatpush1.msra.mxu0 %v417
  %455 = vmatprep.subr.mxu0 0.0
  %456 = vmatpush1.msra.mxu0 %v418
  %457 = vmatprep.subr.mxu0 0.0
  %458 = vmatpush1.msra.mxu0 %v419
  %459 = vmatprep.subr.mxu0 0.0
  %460 = vmatpush1.msra.mxu0 %v420
  %461 = vmatprep.subr.mxu0 0.0
  %462 = vmatpush1.msra.mxu0 0.0
  %463 = vmatprep.subr.mxu0 0.0
  %464 = vmatpush1.msra.mxu0 0.0
  %465 = vmatprep.subr.mxu0 0.0
  %466 = vmatpush1.msra.mxu0 0.0
  %467 = vmatprep.subr.mxu0 0.0
  %468 = vmatpush1.msra.mxu0 0.0
  %469 = vmatprep.subr.mxu0 0.0
  %470 = vmatpush1.msra.mxu0 0.0
  %471 = vmatprep.subr.mxu0 0.0
  %472 = vmatpush1.msra.mxu0 0.0
  %473 = vmatprep.subr.mxu0 0.0
  %474 = vmatpush1.msra.mxu0 0.0
  %475 = vmatprep.subr.mxu0 0.0
  %476 = vmatpush1.msra.mxu0 0.0
  %477 = vmatprep.subr.mxu0 0.0
  %478 = vmatpush1.msra.mxu0 0.0
  %479 = vmatprep.subr.mxu0 0.0
  %480 = vmatpush1.msra.mxu0 0.0
  %481 = vmatprep.subr.mxu0 0.0
  %482 = vmatpush1.msra.mxu0 0.0
  %483 = vmatprep.subr.mxu0 0.0
  %484 = vmatpush1.msra.mxu0 0.0
  %485 = vmatprep.subr.mxu0 0.0
  %486 = vmatpush1.msra.mxu0 0.0
  %487 = vmatprep.subr.mxu0 0.0
  %488 = vmatpush1.msra.mxu0 0.0
  %489 = vmatprep.subr.mxu0 0.0
  %490 = vmatpush1.msra.mxu0 0.0
  %491 = vmatprep.subr.mxu0 0.0
  %492 = vmatpush1.msra.mxu0 0.0
  %493 = vmatprep.mubr.f32.mxu0 0.0
  %494 = vmatmul.mubr.f32.gmra.mrb[0].mxu0 %v366
  %v495 = vpop.f32.mrb[0].mxu0
  %v496 = vadd.f32 %v427, %v495
  %v497 = vpop.f32.mrb[0].mxu0
  %498 = vmatprep.mubr.f32.mxu0 0.0
  %499 = vmatmul.mubr.f32.gmra.mrb[0].mxu0 %v371
  %v500 = vpop.f32.mrb[0].mxu0
  %v501 = vadd.f32 %v427, %v500
  %v502 = vpop.f32.mrb[0].mxu0
  %503 = vmatprep.mubr.f32.mxu0 0.0
  %504 = vmatmul.mubr.f32.gmra.mrb[0].mxu0 %v376
  %v505 = vpop.f32.mrb[0].mxu0
  %v506 = vadd.f32 %v427, %v505
  %v507 = vpop.f32.mrb[0].mxu0
  %508 = vmatprep.mubr.f32.mxu0 0.0
  %509 = vmatmul.mubr.f32.gmra.mrb[0].mxu0 %v381
  %v510 = vpop.f32.mrb[0].mxu0
  %v511 = vadd.f32 %v427, %v510
  %v512 = vpop.f32.mrb[0].mxu0
  %513 = vmatprep.mubr.f32.mxu0 0.0
  %514 = vmatmul.mubr.f32.gmra.mrb[0].mxu0 %v386
  %v515 = vpop.f32.mrb[0].mxu0
  %v516 = vadd.f32 %v427, %v515
  %v517 = vpop.f32.mrb[0].mxu0
  %518 = vmatprep.mubr.f32.mxu0 0.0
  %519 = vmatmul.mubr.f32.gmra.mrb[0].mxu0 %v391
  %v520 = vpop.f32.mrb[0].mxu0
  %v521 = vadd.f32 %v427, %v520
  %v522 = vpop.f32.mrb[0].mxu0
  %523 = vmatprep.mubr.f32.mxu0 0.0
  %524 = vmatmul.mubr.f32.gmra.mrb[0].mxu0 %v396
  %v525 = vpop.f32.mrb[0].mxu0
  %v526 = vadd.f32 %v427, %v525
  %v527 = vpop.f32.mrb[0].mxu0
  %528 = vmatprep.mubr.f32.mxu0 0.0
  %529 = vmatmul.mubr.f32.gmra.mrb[0].mxu0 %v401
  %v530 = vpop.f32.mrb[0].mxu0
  %v531 = vadd.f32 %v427, %v530
  %v532 = vpop.f32.mrb[0].mxu0
  %533 = vdwg.mxu0
  %v534 = vmax.f32 %v496, 0.0
  %v535 = vmax.f32 %v501, 0.0
  %v536 = vmax.f32 %v506, 0.0
  %v537 = vmax.f32 %v511, 0.0
  %v538 = vmax.f32 %v516, 0.0
  %v539 = vmax.f32 %v521, 0.0
  %v540 = vmax.f32 %v526, 0.0
  %v541 = vmax.f32 %v531, 0.0
  %542 = vmatprep.subr.mxu0 0.0
  %543 = vmatpush1.msra.mxu0 %v534
  %544 = vmatprep.subr.mxu0 0.0
  %545 = vmatpush1.msra.mxu0 %v535
  %546 = vmatprep.subr.mxu0 0.0
  %547 = vmatpush1.msra.mxu0 %v536
  %548 = vmatprep.subr.mxu0 0.0
  %549 = vmatpush1.msra.mxu0 %v537
  %550 = vmatprep.subr.mxu0 0.0
  %551 = vmatpush1.msra.mxu0 %v538
  %552 = vmatprep.subr.mxu0 0.0
  %553 = vmatpush1.msra.mxu0 %v539
  %554 = vmatprep.subr.mxu0 0.0
  %555 = vmatpush1.msra.mxu0 %v540
  %556 = vmatprep.subr.mxu0 0.0
  %557 = vmatpush1.msra.mxu0 %v541
  %558 = vmatprep.subr.mxu0 0.0
  %559 = vmatpush1.msra.mxu0 0.0
  %560 = vmatprep.subr.mxu0 0.0
  %561 = vmatpush1.msra.mxu0 0.0
  %562 = vmatprep.subr.mxu0 0.0
  %563 = vmatpush1.msra.mxu0 0.0
  %564 = vmatprep.subr.mxu0 0.0
  %565 = vmatpush1.msra.mxu0 0.0
  %566 = vmatprep.subr.mxu0 0.0
  %567 = vmatpush1.msra.mxu0 0.0
  %568 = vmatprep.subr.mxu0 0.0
  %569 = vmatpush1.msra.mxu0 0.0
  %570 = vmatprep.subr.mxu0 0.0
  %571 = vmatpush1.msra.mxu0 0.0
  %572 = vmatprep.subr.mxu0 0.0
  %573 = vmatpush1.msra.mxu0 0.0
  %574 = vmatprep.subr.mxu0 0.0
  %575 = vmatpush1.msra.mxu0 0.0
  %576 = vmatprep.subr.mxu0 0.0
  %577 = vmatpush1.msra.mxu0 0.0
  %578 = vmatprep.subr.mxu0 0.0
  %579 = vmatpush1.msra.mxu0 0.0
  %580 = vmatprep.subr.mxu0 0.0
  %581 = vmatpush1.msra.mxu0 0.0
  %582 = vmatprep.subr.mxu0 0.0
  %583 = vmatpush1.msra.mxu0 0.0
  %584 = vmatprep.subr.mxu0 0.0
  %585 = vmatpush1.msra.mxu0 0.0
  %586 = vmatprep.subr.mxu0 0.0
  %587 = vmatpush1.msra.mxu0 0.0
  %588 = vmatprep.subr.mxu0 0.0
  %589 = vmatpush1.msra.mxu0 0.0
  %590 = vmatprep.subr.mxu0 0.0
  %591 = vmatpush1.msra.mxu0 0.0
  %592 = vmatprep.subr.mxu0 0.0
  %593 = vmatpush1.msra.mxu0 0.0
  %594 = vmatprep.subr.mxu0 0.0
  %595 = vmatpush1.msra.mxu0 0.0
  %596 = vmatprep.subr.mxu0 0.0
  %597 = vmatpush1.msra.mxu0 0.0
  %598 = vmatprep.subr.mxu0 0.0
  %599 = vmatpush1.msra.mxu0 0.0
  %600 = vmatprep.subr.mxu0 0.0
  %601 = vmatpush1.msra.mxu0 0.0
  %602 = vmatprep.subr.mxu0 0.0
  %603 = vmatpush1.msra.mxu0 0.0
  %604 = vmatprep.subr.mxu0 0.0
  %605 = vmatpush1.msra.mxu0 0.0
  %606 = vmatprep.mubr.f32.mxu0 0.0
  %607 = vmatmul.mubr.f32.gmra.mrb[0].mxu0 %v35
  %v608 = vpop.f32.mrb[0].mxu0
  %v609 = vadd.f32 0.0, %v608
  %v610 = vpop.f32.mrb[0].mxu0
  %611 = vmatprep.mubr.f32.mxu0 0.0
  %612 = vmatmul.mubr.f32.gmra.mrb[0].mxu0 %v38
  %v613 = vpop.f32.mrb[0].mxu0
  %v614 = vadd.f32 0.0, %v613
  %v615 = vpop.f32.mrb[0].mxu0
  %616 = vmatprep.mubr.f32.mxu0 0.0
  %617 = vmatmul.mubr.f32.gmra.mrb[0].mxu0 %v41
  %v618 = vpop.f32.mrb[0].mxu0
  %v619 = vadd.f32 0.0, %v618
  %v620 = vpop.f32.mrb[0].mxu0
  %621 = vmatprep.mubr.f32.mxu0 0.0
  %622 = vmatmul.mubr.f32.gmra.mrb[0].mxu0 %v44
  %v623 = vpop.f32.mrb[0].mxu0
  %v624 = vadd.f32 0.0, %v623
  %v625 = vpop.f32.mrb[0].mxu0
  %626 = vmatprep.mubr.f32.mxu0 0.0
  %627 = vmatmul.mubr.f32.gmra.mrb[0].mxu0 %v47
  %v628 = vpop.f32.mrb[0].mxu0
  %v629 = vadd.f32 0.0, %v628
  %v630 = vpop.f32.mrb[0].mxu0
  %631 = vmatprep.mubr.f32.mxu0 0.0
  %632 = vmatmul.mubr.f32.gmra.mrb[0].mxu0 %v50
  %v633 = vpop.f32.mrb[0].mxu0
  %v634 = vadd.f32 0.0, %v633
  %v635 = vpop.f32.mrb[0].mxu0
  %636 = vmatprep.mubr.f32.mxu0 0.0
  %637 = vmatmul.mubr.f32.gmra.mrb[0].mxu0 %v53
  %v638 = vpop.f32.mrb[0].mxu0
  %v639 = vadd.f32 0.0, %v638
  %v640 = vpop.f32.mrb[0].mxu0
  %641 = vmatprep.mubr.f32.mxu0 0.0
  %642 = vmatmul.mubr.f32.gmra.mrb[0].mxu0 %v56
  %v643 = vpop.f32.mrb[0].mxu0
  %v644 = vadd.f32 0.0, %v643
  %v645 = vpop.f32.mrb[0].mxu0
  %646 = vdwg.mxu0
  %s647 = scalar_lea.vmem %s2, 256
  %v648 = vld [vmem:[%s647] sm:$0xff]
  %v649 = vld [vmem:[%s647 + $0x8] sm:$0xff]
  %v650 = vld [vmem:[%s647 + $0x10] sm:$0xff]
  %v651 = vld [vmem:[%s647 + $0x18] sm:$0xff]
  %v652 = vld [vmem:[%s647 + $0x20] sm:$0xff]
  %v653 = vld [vmem:[%s647 + $0x28] sm:$0xff]
  %v654 = vld [vmem:[%s647 + $0x30] sm:$0xff]
  %v655 = vld [vmem:[%s647 + $0x38] sm:$0xff]
  %v656 = vld [vmem:[%s647 + $0x40] sm:$0xff]
  %v657 = vld [vmem:[%s647 + $0x48] sm:$0xff]
  %v658 = vld [vmem:[%s647 + $0x50] sm:$0xff]
  %v659 = vld [vmem:[%s647 + $0x58] sm:$0xff]
  %v660 = vld [vmem:[%s647 + $0x60] sm:$0xff]
  %v661 = vld [vmem:[%s647 + $0x68] sm:$0xff]
  %v662 = vld [vmem:[%s647 + $0x70] sm:$0xff]
  %v663 = vld [vmem:[%s647 + $0x78] sm:$0xff]
  %s664 = scalar_lea.vmem %s3, 2
  %v665 = vld [vmem:[%s664] sm:$0x1]
  %v667 = vlaneseq
  %v668 = vshrl.u32 %v667, 7
  %v669 = vsub.s32 0, %v668
  %v670 = vrot.slane %v665, %v669
  %672 = vmatprep.subr.mxu0 0.0
  %673 = vmatpush1.msra.mxu0 %v648
  %674 = vmatprep.subr.mxu0 0.0
  %675 = vmatpush1.msra.mxu0 %v649
  %676 = vmatprep.subr.mxu0 0.0
  %677 = vmatpush1.msra.mxu0 %v650
  %678 = vmatprep.subr.mxu0 0.0
  %679 = vmatpush1.msra.mxu0 %v651
  %680 = vmatprep.subr.mxu0 0.0
  %681 = vmatpush1.msra.mxu0 %v652
  %682 = vmatprep.subr.mxu0 0.0
  %683 = vmatpush1.msra.mxu0 %v653
  %684 = vmatprep.subr.mxu0 0.0
  %685 = vmatpush1.msra.mxu0 %v654
  %686 = vmatprep.subr.mxu0 0.0
  %687 = vmatpush1.msra.mxu0 %v655
  %688 = vmatprep.subr.mxu0 0.0
  %689 = vmatpush1.msra.mxu0 %v656
  %690 = vmatprep.subr.mxu0 0.0
  %691 = vmatpush1.msra.mxu0 %v657
  %692 = vmatprep.subr.mxu0 0.0
  %693 = vmatpush1.msra.mxu0 %v658
  %694 = vmatprep.subr.mxu0 0.0
  %695 = vmatpush1.msra.mxu0 %v659
  %696 = vmatprep.subr.mxu0 0.0
  %697 = vmatpush1.msra.mxu0 %v660
  %698 = vmatprep.subr.mxu0 0.0
  %699 = vmatpush1.msra.mxu0 %v661
  %700 = vmatprep.subr.mxu0 0.0
  %701 = vmatpush1.msra.mxu0 %v662
  %702 = vmatprep.subr.mxu0 0.0
  %703 = vmatpush1.msra.mxu0 %v663
  %704 = vmatprep.subr.mxu0 0.0
  %705 = vmatpush1.msra.mxu0 0.0
  %706 = vmatprep.subr.mxu0 0.0
  %707 = vmatpush1.msra.mxu0 0.0
  %708 = vmatprep.subr.mxu0 0.0
  %709 = vmatpush1.msra.mxu0 0.0
  %710 = vmatprep.subr.mxu0 0.0
  %711 = vmatpush1.msra.mxu0 0.0
  %712 = vmatprep.subr.mxu0 0.0
  %713 = vmatpush1.msra.mxu0 0.0
  %714 = vmatprep.subr.mxu0 0.0
  %715 = vmatpush1.msra.mxu0 0.0
  %716 = vmatprep.subr.mxu0 0.0
  %717 = vmatpush1.msra.mxu0 0.0
  %718 = vmatprep.subr.mxu0 0.0
  %719 = vmatpush1.msra.mxu0 0.0
  %720 = vmatprep.subr.mxu0 0.0
  %721 = vmatpush1.msra.mxu0 0.0
  %722 = vmatprep.subr.mxu0 0.0
  %723 = vmatpush1.msra.mxu0 0.0
  %724 = vmatprep.subr.mxu0 0.0
  %725 = vmatpush1.msra.mxu0 0.0
  %726 = vmatprep.subr.mxu0 0.0
  %727 = vmatpush1.msra.mxu0 0.0
  %728 = vmatprep.subr.mxu0 0.0
  %729 = vmatpush1.msra.mxu0 0.0
  %730 = vmatprep.subr.mxu0 0.0
  %731 = vmatpush1.msra.mxu0 0.0
  %732 = vmatprep.subr.mxu0 0.0
  %733 = vmatpush1.msra.mxu0 0.0
  %734 = vmatprep.subr.mxu0 0.0
  %735 = vmatpush1.msra.mxu0 0.0
  %736 = vmatprep.mubr.f32.mxu0 0.0
  %737 = vmatmul.mubr.f32.gmra.mrb[0].mxu0 %v609
  %v738 = vpop.f32.mrb[0].mxu0
  %v739 = vadd.f32 %v670, %v738
  %v740 = vpop.f32.mrb[0].mxu0
  %741 = vmatprep.mubr.f32.mxu0 0.0
  %742 = vmatmul.mubr.f32.gmra.mrb[0].mxu0 %v614
  %v743 = vpop.f32.mrb[0].mxu0
  %v744 = vadd.f32 %v670, %v743
  %v745 = vpop.f32.mrb[0].mxu0
  %746 = vmatprep.mubr.f32.mxu0 0.0
  %747 = vmatmul.mubr.f32.gmra.mrb[0].mxu0 %v619
  %v748 = vpop.f32.mrb[0].mxu0
  %v749 = vadd.f32 %v670, %v748
  %v750 = vpop.f32.mrb[0].mxu0
  %751 = vmatprep.mubr.f32.mxu0 0.0
  %752 = vmatmul.mubr.f32.gmra.mrb[0].mxu0 %v624
  %v753 = vpop.f32.mrb[0].mxu0
  %v754 = vadd.f32 %v670, %v753
  %v755 = vpop.f32.mrb[0].mxu0
  %756 = vmatprep.mubr.f32.mxu0 0.0
  %757 = vmatmul.mubr.f32.gmra.mrb[0].mxu0 %v629
  %v758 = vpop.f32.mrb[0].mxu0
  %v759 = vadd.f32 %v670, %v758
  %v760 = vpop.f32.mrb[0].mxu0
  %761 = vmatprep.mubr.f32.mxu0 0.0
  %762 = vmatmul.mubr.f32.gmra.mrb[0].mxu0 %v634
  %v763 = vpop.f32.mrb[0].mxu0
  %v764 = vadd.f32 %v670, %v763
  %v765 = vpop.f32.mrb[0].mxu0
  %766 = vmatprep.mubr.f32.mxu0 0.0
  %767 = vmatmul.mubr.f32.gmra.mrb[0].mxu0 %v639
  %v768 = vpop.f32.mrb[0].mxu0
  %v769 = vadd.f32 %v670, %v768
  %v770 = vpop.f32.mrb[0].mxu0
  %771 = vmatprep.mubr.f32.mxu0 0.0
  %772 = vmatmul.mubr.f32.gmra.mrb[0].mxu0 %v644
  %v773 = vpop.f32.mrb[0].mxu0
  %v774 = vadd.f32 %v670, %v773
  %v775 = vpop.f32.mrb[0].mxu0
  %776 = vdwg.mxu0
  %v777 = vmax.f32 %v739, 0.0
  %v778 = vmax.f32 %v744, 0.0
  %v779 = vmax.f32 %v749, 0.0
  %v780 = vmax.f32 %v754, 0.0
  %v781 = vmax.f32 %v759, 0.0
  %v782 = vmax.f32 %v764, 0.0
  %v783 = vmax.f32 %v769, 0.0
  %v784 = vmax.f32 %v774, 0.0
  %785 = vmatprep.subr.mxu0 0.0
  %786 = vmatpush1.msra.mxu0 %v777
  %787 = vmatprep.subr.mxu0 0.0
  %788 = vmatpush1.msra.mxu0 %v778
  %789 = vmatprep.subr.mxu0 0.0
  %790 = vmatpush1.msra.mxu0 %v779
  %791 = vmatprep.subr.mxu0 0.0
  %792 = vmatpush1.msra.mxu0 %v780
  %793 = vmatprep.subr.mxu0 0.0
  %794 = vmatpush1.msra.mxu0 %v781
  %795 = vmatprep.subr.mxu0 0.0
  %796 = vmatpush1.msra.mxu0 %v782
  %797 = vmatprep.subr.mxu0 0.0
  %798 = vmatpush1.msra.mxu0 %v783
  %799 = vmatprep.subr.mxu0 0.0
  %800 = vmatpush1.msra.mxu0 %v784
  %801 = vmatprep.subr.mxu0 0.0
  %802 = vmatpush1.msra.mxu0 0.0
  %803 = vmatprep.subr.mxu0 0.0
  %804 = vmatpush1.msra.mxu0 0.0
  %805 = vmatprep.subr.mxu0 0.0
  %806 = vmatpush1.msra.mxu0 0.0
  %807 = vmatprep.subr.mxu0 0.0
  %808 = vmatpush1.msra.mxu0 0.0
  %809 = vmatprep.subr.mxu0 0.0
  %810 = vmatpush1.msra.mxu0 0.0
  %811 = vmatprep.subr.mxu0 0.0
  %812 = vmatpush1.msra.mxu0 0.0
  %813 = vmatprep.subr.mxu0 0.0
  %814 = vmatpush1.msra.mxu0 0.0
  %815 = vmatprep.subr.mxu0 0.0
  %816 = vmatpush1.msra.mxu0 0.0
  %817 = vmatprep.subr.mxu0 0.0
  %818 = vmatpush1.msra.mxu0 0.0
  %819 = vmatprep.subr.mxu0 0.0
  %820 = vmatpush1.msra.mxu0 0.0
  %821 = vmatprep.subr.mxu0 0.0
  %822 = vmatpush1.msra.mxu0 0.0
  %823 = vmatprep.subr.mxu0 0.0
  %824 = vmatpush1.msra.mxu0 0.0
  %825 = vmatprep.subr.mxu0 0.0
  %826 = vmatpush1.msra.mxu0 0.0
  %827 = vmatprep.subr.mxu0 0.0
  %828 = vmatpush1.msra.mxu0 0.0
  %829 = vmatprep.subr.mxu0 0.0
  %830 = vmatpush1.msra.mxu0 0.0
  %831 = vmatprep.subr.mxu0 0.0
  %832 = vmatpush1.msra.mxu0 0.0
  %833 = vmatprep.subr.mxu0 0.0
  %834 = vmatpush1.msra.mxu0 0.0
  %835 = vmatprep.subr.mxu0 0.0
  %836 = vmatpush1.msra.mxu0 0.0
  %837 = vmatprep.subr.mxu0 0.0
  %838 = vmatpush1.msra.mxu0 0.0
  %839 = vmatprep.subr.mxu0 0.0
  %840 = vmatpush1.msra.mxu0 0.0
  %841 = vmatprep.subr.mxu0 0.0
  %842 = vmatpush1.msra.mxu0 0.0
  %843 = vmatprep.subr.mxu0 0.0
  %844 = vmatpush1.msra.mxu0 0.0
  %845 = vmatprep.subr.mxu0 0.0
  %846 = vmatpush1.msra.mxu0 0.0
  %847 = vmatprep.subr.mxu0 0.0
  %848 = vmatpush1.msra.mxu0 0.0
  %849 = vmatprep.mubr.f32.mxu0 0.0
  %850 = vmatmul.mubr.f32.gmra.mrb[0].mxu0 %v35
  %v851 = vpop.f32.mrb[0].mxu0
  %v852 = vadd.f32 0.0, %v851
  %v853 = vpop.f32.mrb[0].mxu0
  %854 = vmatprep.mubr.f32.mxu0 0.0
  %855 = vmatmul.mubr.f32.gmra.mrb[0].mxu0 %v38
  %v856 = vpop.f32.mrb[0].mxu0
  %v857 = vadd.f32 0.0, %v856
  %v858 = vpop.f32.mrb[0].mxu0
  %859 = vmatprep.mubr.f32.mxu0 0.0
  %860 = vmatmul.mubr.f32.gmra.mrb[0].mxu0 %v41
  %v861 = vpop.f32.mrb[0].mxu0
  %v862 = vadd.f32 0.0, %v861
  %v863 = vpop.f32.mrb[0].mxu0
  %864 = vmatprep.mubr.f32.mxu0 0.0
  %865 = vmatmul.mubr.f32.gmra.mrb[0].mxu0 %v44
  %v866 = vpop.f32.mrb[0].mxu0
  %v867 = vadd.f32 0.0, %v866
  %v868 = vpop.f32.mrb[0].mxu0
  %869 = vmatprep.mubr.f32.mxu0 0.0
  %870 = vmatmul.mubr.f32.gmra.mrb[0].mxu0 %v47
  %v871 = vpop.f32.mrb[0].mxu0
  %v872 = vadd.f32 0.0, %v871
  %v873 = vpop.f32.mrb[0].mxu0
  %874 = vmatprep.mubr.f32.mxu0 0.0
  %875 = vmatmul.mubr.f32.gmra.mrb[0].mxu0 %v50
  %v876 = vpop.f32.mrb[0].mxu0
  %v877 = vadd.f32 0.0, %v876
  %v878 = vpop.f32.mrb[0].mxu0
  %879 = vmatprep.mubr.f32.mxu0 0.0
  %880 = vmatmul.mubr.f32.gmra.mrb[0].mxu0 %v53
  %v881 = vpop.f32.mrb[0].mxu0
  %v882 = vadd.f32 0.0, %v881
  %v883 = vpop.f32.mrb[0].mxu0
  %884 = vmatprep.mubr.f32.mxu0 0.0
  %885 = vmatmul.mubr.f32.gmra.mrb[0].mxu0 %v56
  %v886 = vpop.f32.mrb[0].mxu0
  %v887 = vadd.f32 0.0, %v886
  %v888 = vpop.f32.mrb[0].mxu0
  %889 = vdwg.mxu0
  %s890 = scalar_lea.vmem %s2, 384
  %v891 = vld [vmem:[%s890] sm:$0xff]
  %v892 = vld [vmem:[%s890 + $0x8] sm:$0xff]
  %v893 = vld [vmem:[%s890 + $0x10] sm:$0xff]
  %v894 = vld [vmem:[%s890 + $0x18] sm:$0xff]
  %v895 = vld [vmem:[%s890 + $0x20] sm:$0xff]
  %v896 = vld [vmem:[%s890 + $0x28] sm:$0xff]
  %v897 = vld [vmem:[%s890 + $0x30] sm:$0xff]
  %v898 = vld [vmem:[%s890 + $0x38] sm:$0xff]
  %v899 = vld [vmem:[%s890 + $0x40] sm:$0xff]
  %v900 = vld [vmem:[%s890 + $0x48] sm:$0xff]
  %v901 = vld [vmem:[%s890 + $0x50] sm:$0xff]
  %v902 = vld [vmem:[%s890 + $0x58] sm:$0xff]
  %v903 = vld [vmem:[%s890 + $0x60] sm:$0xff]
  %v904 = vld [vmem:[%s890 + $0x68] sm:$0xff]
  %v905 = vld [vmem:[%s890 + $0x70] sm:$0xff]
  %v906 = vld [vmem:[%s890 + $0x78] sm:$0xff]
  %s907 = scalar_lea.vmem %s3, 3
  %v908 = vld [vmem:[%s907] sm:$0x1]
  %v910 = vlaneseq
  %v911 = vshrl.u32 %v910, 7
  %v912 = vsub.s32 0, %v911
  %v913 = vrot.slane %v908, %v912
  %915 = vmatprep.subr.mxu0 0.0
  %916 = vmatpush1.msra.mxu0 %v891
  %917 = vmatprep.subr.mxu0 0.0
  %918 = vmatpush1.msra.mxu0 %v892
  %919 = vmatprep.subr.mxu0 0.0
  %920 = vmatpush1.msra.mxu0 %v893
  %921 = vmatprep.subr.mxu0 0.0
  %922 = vmatpush1.msra.mxu0 %v894
  %923 = vmatprep.subr.mxu0 0.0
  %924 = vmatpush1.msra.mxu0 %v895
  %925 = vmatprep.subr.mxu0 0.0
  %926 = vmatpush1.msra.mxu0 %v896
  %927 = vmatprep.subr.mxu0 0.0
  %928 = vmatpush1.msra.mxu0 %v897
  %929 = vmatprep.subr.mxu0 0.0
  %930 = vmatpush1.msra.mxu0 %v898
  %931 = vmatprep.subr.mxu0 0.0
  %932 = vmatpush1.msra.mxu0 %v899
  %933 = vmatprep.subr.mxu0 0.0
  %934 = vmatpush1.msra.mxu0 %v900
  %935 = vmatprep.subr.mxu0 0.0
  %936 = vmatpush1.msra.mxu0 %v901
  %937 = vmatprep.subr.mxu0 0.0
  %938 = vmatpush1.msra.mxu0 %v902
  %939 = vmatprep.subr.mxu0 0.0
  %940 = vmatpush1.msra.mxu0 %v903
  %941 = vmatprep.subr.mxu0 0.0
  %942 = vmatpush1.msra.mxu0 %v904
  %943 = vmatprep.subr.mxu0 0.0
  %944 = vmatpush1.msra.mxu0 %v905
  %945 = vmatprep.subr.mxu0 0.0
  %946 = vmatpush1.msra.mxu0 %v906
  %947 = vmatprep.subr.mxu0 0.0
  %948 = vmatpush1.msra.mxu0 0.0
  %949 = vmatprep.subr.mxu0 0.0
  %950 = vmatpush1.msra.mxu0 0.0
  %951 = vmatprep.subr.mxu0 0.0
  %952 = vmatpush1.msra.mxu0 0.0
  %953 = vmatprep.subr.mxu0 0.0
  %954 = vmatpush1.msra.mxu0 0.0
  %955 = vmatprep.subr.mxu0 0.0
  %956 = vmatpush1.msra.mxu0 0.0
  %957 = vmatprep.subr.mxu0 0.0
  %958 = vmatpush1.msra.mxu0 0.0
  %959 = vmatprep.subr.mxu0 0.0
  %960 = vmatpush1.msra.mxu0 0.0
  %961 = vmatprep.subr.mxu0 0.0
  %962 = vmatpush1.msra.mxu0 0.0
  %963 = vmatprep.subr.mxu0 0.0
  %964 = vmatpush1.msra.mxu0 0.0
  %965 = vmatprep.subr.mxu0 0.0
  %966 = vmatpush1.msra.mxu0 0.0
  %967 = vmatprep.subr.mxu0 0.0
  %968 = vmatpush1.msra.mxu0 0.0
  %969 = vmatprep.subr.mxu0 0.0
  %970 = vmatpush1.msra.mxu0 0.0
  %971 = vmatprep.subr.mxu0 0.0
  %972 = vmatpush1.msra.mxu0 0.0
  %973 = vmatprep.subr.mxu0 0.0
  %974 = vmatpush1.msra.mxu0 0.0
  %975 = vmatprep.subr.mxu0 0.0
  %976 = vmatpush1.msra.mxu0 0.0
  %977 = vmatprep.subr.mxu0 0.0
  %978 = vmatpush1.msra.mxu0 0.0
  %979 = vmatprep.mubr.f32.mxu0 0.0
  %980 = vmatmul.mubr.f32.gmra.mrb[0].mxu0 %v852
  %v981 = vpop.f32.mrb[0].mxu0
  %v982 = vadd.f32 %v913, %v981
  %v983 = vpop.f32.mrb[0].mxu0
  %984 = vmatprep.mubr.f32.mxu0 0.0
  %985 = vmatmul.mubr.f32.gmra.mrb[0].mxu0 %v857
  %v986 = vpop.f32.mrb[0].mxu0
  %v987 = vadd.f32 %v913, %v986
  %v988 = vpop.f32.mrb[0].mxu0
  %989 = vmatprep.mubr.f32.mxu0 0.0
  %990 = vmatmul.mubr.f32.gmra.mrb[0].mxu0 %v862
  %v991 = vpop.f32.mrb[0].mxu0
  %v992 = vadd.f32 %v913, %v991
  %v993 = vpop.f32.mrb[0].mxu0
  %994 = vmatprep.mubr.f32.mxu0 0.0
  %995 = vmatmul.mubr.f32.gmra.mrb[0].mxu0 %v867
  %v996 = vpop.f32.mrb[0].mxu0
  %v997 = vadd.f32 %v913, %v996
  %v998 = vpop.f32.mrb[0].mxu0
  %999 = vmatprep.mubr.f32.mxu0 0.0
  %1000 = vmatmul.mubr.f32.gmra.mrb[0].mxu0 %v872
  %v1001 = vpop.f32.mrb[0].mxu0
  %v1002 = vadd.f32 %v913, %v1001
  %v1003 = vpop.f32.mrb[0].mxu0
  %1004 = vmatprep.mubr.f32.mxu0 0.0
  %1005 = vmatmul.mubr.f32.gmra.mrb[0].mxu0 %v877
  %v1006 = vpop.f32.mrb[0].mxu0
  %v1007 = vadd.f32 %v913, %v1006
  %v1008 = vpop.f32.mrb[0].mxu0
  %1009 = vmatprep.mubr.f32.mxu0 0.0
  %1010 = vmatmul.mubr.f32.gmra.mrb[0].mxu0 %v882
  %v1011 = vpop.f32.mrb[0].mxu0
  %v1012 = vadd.f32 %v913, %v1011
  %v1013 = vpop.f32.mrb[0].mxu0
  %1014 = vmatprep.mubr.f32.mxu0 0.0
  %1015 = vmatmul.mubr.f32.gmra.mrb[0].mxu0 %v887
  %v1016 = vpop.f32.mrb[0].mxu0
  %v1017 = vadd.f32 %v913, %v1016
  %v1018 = vpop.f32.mrb[0].mxu0
  %1019 = vdwg.mxu0
  %v1020 = vmax.f32 %v982, 0.0
  %v1021 = vmax.f32 %v987, 0.0
  %v1022 = vmax.f32 %v992, 0.0
  %v1023 = vmax.f32 %v997, 0.0
  %v1024 = vmax.f32 %v1002, 0.0
  %v1025 = vmax.f32 %v1007, 0.0
  %v1026 = vmax.f32 %v1012, 0.0
  %v1027 = vmax.f32 %v1017, 0.0
  %1028 = vmatprep.subr.mxu0 0.0
  %1029 = vmatpush1.msra.mxu0 %v1020
  %1030 = vmatprep.subr.mxu0 0.0
  %1031 = vmatpush1.msra.mxu0 %v1021
  %1032 = vmatprep.subr.mxu0 0.0
  %1033 = vmatpush1.msra.mxu0 %v1022
  %1034 = vmatprep.subr.mxu0 0.0
  %1035 = vmatpush1.msra.mxu0 %v1023
  %1036 = vmatprep.subr.mxu0 0.0
  %1037 = vmatpush1.msra.mxu0 %v1024
  %1038 = vmatprep.subr.mxu0 0.0
  %1039 = vmatpush1.msra.mxu0 %v1025
  %1040 = vmatprep.subr.mxu0 0.0
  %1041 = vmatpush1.msra.mxu0 %v1026
  %1042 = vmatprep.subr.mxu0 0.0
  %1043 = vmatpush1.msra.mxu0 %v1027
  %1044 = vmatprep.subr.mxu0 0.0
  %1045 = vmatpush1.msra.mxu0 0.0
  %1046 = vmatprep.subr.mxu0 0.0
  %1047 = vmatpush1.msra.mxu0 0.0
  %1048 = vmatprep.subr.mxu0 0.0
  %1049 = vmatpush1.msra.mxu0 0.0
  %1050 = vmatprep.subr.mxu0 0.0
  %1051 = vmatpush1.msra.mxu0 0.0
  %1052 = vmatprep.subr.mxu0 0.0
  %1053 = vmatpush1.msra.mxu0 0.0
  %1054 = vmatprep.subr.mxu0 0.0
  %1055 = vmatpush1.msra.mxu0 0.0
  %1056 = vmatprep.subr.mxu0 0.0
  %1057 = vmatpush1.msra.mxu0 0.0
  %1058 = vmatprep.subr.mxu0 0.0
  %1059 = vmatpush1.msra.mxu0 0.0
  %1060 = vmatprep.subr.mxu0 0.0
  %1061 = vmatpush1.msra.mxu0 0.0
  %1062 = vmatprep.subr.mxu0 0.0
  %1063 = vmatpush1.msra.mxu0 0.0
  %1064 = vmatprep.subr.mxu0 0.0
  %1065 = vmatpush1.msra.mxu0 0.0
  %1066 = vmatprep.subr.mxu0 0.0
  %1067 = vmatpush1.msra.mxu0 0.0
  %1068 = vmatprep.subr.mxu0 0.0
  %1069 = vmatpush1.msra.mxu0 0.0
  %1070 = vmatprep.subr.mxu0 0.0
  %1071 = vmatpush1.msra.mxu0 0.0
  %1072 = vmatprep.subr.mxu0 0.0
  %1073 = vmatpush1.msra.mxu0 0.0
  %1074 = vmatprep.subr.mxu0 0.0
  %1075 = vmatpush1.msra.mxu0 0.0
  %1076 = vmatprep.subr.mxu0 0.0
  %1077 = vmatpush1.msra.mxu0 0.0
  %1078 = vmatprep.subr.mxu0 0.0
  %1079 = vmatpush1.msra.mxu0 0.0
  %1080 = vmatprep.subr.mxu0 0.0
  %1081 = vmatpush1.msra.mxu0 0.0
  %1082 = vmatprep.subr.mxu0 0.0
  %1083 = vmatpush1.msra.mxu0 0.0
  %1084 = vmatprep.subr.mxu0 0.0
  %1085 = vmatpush1.msra.mxu0 0.0
  %1086 = vmatprep.subr.mxu0 0.0
  %1087 = vmatpush1.msra.mxu0 0.0
  %1088 = vmatprep.subr.mxu0 0.0
  %1089 = vmatpush1.msra.mxu0 0.0
  %1090 = vmatprep.subr.mxu0 0.0
  %1091 = vmatpush1.msra.mxu0 0.0
  %1092 = vmatprep.mubr.f32.mxu0 0.0
  %1093 = vmatmul.mubr.f32.gmra.mrb[0].mxu0 %v35
  %v1094 = vpop.f32.mrb[0].mxu0
  %v1095 = vadd.f32 0.0, %v1094
  %v1096 = vpop.f32.mrb[0].mxu0
  %1097 = vmatprep.mubr.f32.mxu0 0.0
  %1098 = vmatmul.mubr.f32.gmra.mrb[0].mxu0 %v38
  %v1099 = vpop.f32.mrb[0].mxu0
  %v1100 = vadd.f32 0.0, %v1099
  %v1101 = vpop.f32.mrb[0].mxu0
  %1102 = vmatprep.mubr.f32.mxu0 0.0
  %1103 = vmatmul.mubr.f32.gmra.mrb[0].mxu0 %v41
  %v1104 = vpop.f32.mrb[0].mxu0
  %v1105 = vadd.f32 0.0, %v1104
  %v1106 = vpop.f32.mrb[0].mxu0
  %1107 = vmatprep.mubr.f32.mxu0 0.0
  %1108 = vmatmul.mubr.f32.gmra.mrb[0].mxu0 %v44
  %v1109 = vpop.f32.mrb[0].mxu0
  %v1110 = vadd.f32 0.0, %v1109
  %v1111 = vpop.f32.mrb[0].mxu0
  %1112 = vmatprep.mubr.f32.mxu0 0.0
  %1113 = vmatmul.mubr.f32.gmra.mrb[0].mxu0 %v47
  %v1114 = vpop.f32.mrb[0].mxu0
  %v1115 = vadd.f32 0.0, %v1114
  %v1116 = vpop.f32.mrb[0].mxu0
  %1117 = vmatprep.mubr.f32.mxu0 0.0
  %1118 = vmatmul.mubr.f32.gmra.mrb[0].mxu0 %v50
  %v1119 = vpop.f32.mrb[0].mxu0
  %v1120 = vadd.f32 0.0, %v1119
  %v1121 = vpop.f32.mrb[0].mxu0
  %1122 = vmatprep.mubr.f32.mxu0 0.0
  %1123 = vmatmul.mubr.f32.gmra.mrb[0].mxu0 %v53
  %v1124 = vpop.f32.mrb[0].mxu0
  %v1125 = vadd.f32 0.0, %v1124
  %v1126 = vpop.f32.mrb[0].mxu0
  %1127 = vmatprep.mubr.f32.mxu0 0.0
  %1128 = vmatmul.mubr.f32.gmra.mrb[0].mxu0 %v56
  %v1129 = vpop.f32.mrb[0].mxu0
  %v1130 = vadd.f32 0.0, %v1129
  %v1131 = vpop.f32.mrb[0].mxu0
  %1132 = vdwg.mxu0
  %s1133 = scalar_lea.vmem %s2, 512
  %v1134 = vld [vmem:[%s1133] sm:$0xff]
  %v1135 = vld [vmem:[%s1133 + $0x8] sm:$0xff]
  %v1136 = vld [vmem:[%s1133 + $0x10] sm:$0xff]
  %v1137 = vld [vmem:[%s1133 + $0x18] sm:$0xff]
  %v1138 = vld [vmem:[%s1133 + $0x20] sm:$0xff]
  %v1139 = vld [vmem:[%s1133 + $0x28] sm:$0xff]
  %v1140 = vld [vmem:[%s1133 + $0x30] sm:$0xff]
  %v1141 = vld [vmem:[%s1133 + $0x38] sm:$0xff]
  %v1142 = vld [vmem:[%s1133 + $0x40] sm:$0xff]
  %v1143 = vld [vmem:[%s1133 + $0x48] sm:$0xff]
  %v1144 = vld [vmem:[%s1133 + $0x50] sm:$0xff]
  %v1145 = vld [vmem:[%s1133 + $0x58] sm:$0xff]
  %v1146 = vld [vmem:[%s1133 + $0x60] sm:$0xff]
  %v1147 = vld [vmem:[%s1133 + $0x68] sm:$0xff]
  %v1148 = vld [vmem:[%s1133 + $0x70] sm:$0xff]
  %v1149 = vld [vmem:[%s1133 + $0x78] sm:$0xff]
  %s1150 = scalar_lea.vmem %s3, 4
  %v1151 = vld [vmem:[%s1150] sm:$0x1]
  %v1153 = vlaneseq
  %v1154 = vshrl.u32 %v1153, 7
  %v1155 = vsub.s32 0, %v1154
  %v1156 = vrot.slane %v1151, %v1155
  %1158 = vmatprep.subr.mxu0 0.0
  %1159 = vmatpush1.msra.mxu0 %v1134
  %1160 = vmatprep.subr.mxu0 0.0
  %1161 = vmatpush1.msra.mxu0 %v1135
  %1162 = vmatprep.subr.mxu0 0.0
  %1163 = vmatpush1.msra.mxu0 %v1136
  %1164 = vmatprep.subr.mxu0 0.0
  %1165 = vmatpush1.msra.mxu0 %v1137
  %1166 = vmatprep.subr.mxu0 0.0
  %1167 = vmatpush1.msra.mxu0 %v1138
  %1168 = vmatprep.subr.mxu0 0.0
  %1169 = vmatpush1.msra.mxu0 %v1139
  %1170 = vmatprep.subr.mxu0 0.0
  %1171 = vmatpush1.msra.mxu0 %v1140
  %1172 = vmatprep.subr.mxu0 0.0
  %1173 = vmatpush1.msra.mxu0 %v1141
  %1174 = vmatprep.subr.mxu0 0.0
  %1175 = vmatpush1.msra.mxu0 %v1142
  %1176 = vmatprep.subr.mxu0 0.0
  %1177 = vmatpush1.msra.mxu0 %v1143
  %1178 = vmatprep.subr.mxu0 0.0
  %1179 = vmatpush1.msra.mxu0 %v1144
  %1180 = vmatprep.subr.mxu0 0.0
  %1181 = vmatpush1.msra.mxu0 %v1145
  %1182 = vmatprep.subr.mxu0 0.0
  %1183 = vmatpush1.msra.mxu0 %v1146
  %1184 = vmatprep.subr.mxu0 0.0
  %1185 = vmatpush1.msra.mxu0 %v1147
  %1186 = vmatprep.subr.mxu0 0.0
  %1187 = vmatpush1.msra.mxu0 %v1148
  %1188 = vmatprep.subr.mxu0 0.0
  %1189 = vmatpush1.msra.mxu0 %v1149
  %1190 = vmatprep.subr.mxu0 0.0
  %1191 = vmatpush1.msra.mxu0 0.0
  %1192 = vmatprep.subr.mxu0 0.0
  %1193 = vmatpush1.msra.mxu0 0.0
  %1194 = vmatprep.subr.mxu0 0.0
  %1195 = vmatpush1.msra.mxu0 0.0
  %1196 = vmatprep.subr.mxu0 0.0
  %1197 = vmatpush1.msra.mxu0 0.0
  %1198 = vmatprep.subr.mxu0 0.0
  %1199 = vmatpush1.msra.mxu0 0.0
  %1200 = vmatprep.subr.mxu0 0.0
  %1201 = vmatpush1.msra.mxu0 0.0
  %1202 = vmatprep.subr.mxu0 0.0
  %1203 = vmatpush1.msra.mxu0 0.0
  %1204 = vmatprep.subr.mxu0 0.0
  %1205 = vmatpush1.msra.mxu0 0.0
  %1206 = vmatprep.subr.mxu0 0.0
  %1207 = vmatpush1.msra.mxu0 0.0
  %1208 = vmatprep.subr.mxu0 0.0
  %1209 = vmatpush1.msra.mxu0 0.0
  %1210 = vmatprep.subr.mxu0 0.0
  %1211 = vmatpush1.msra.mxu0 0.0
  %1212 = vmatprep.subr.mxu0 0.0
  %1213 = vmatpush1.msra.mxu0 0.0
  %1214 = vmatprep.subr.mxu0 0.0
  %1215 = vmatpush1.msra.mxu0 0.0
  %1216 = vmatprep.subr.mxu0 0.0
  %1217 = vmatpush1.msra.mxu0 0.0
  %1218 = vmatprep.subr.mxu0 0.0
  %1219 = vmatpush1.msra.mxu0 0.0
  %1220 = vmatprep.subr.mxu0 0.0
  %1221 = vmatpush1.msra.mxu0 0.0
  %1222 = vmatprep.mubr.f32.mxu0 0.0
  %1223 = vmatmul.mubr.f32.gmra.mrb[0].mxu0 %v1095
  %v1224 = vpop.f32.mrb[0].mxu0
  %v1225 = vadd.f32 %v1156, %v1224
  %v1226 = vpop.f32.mrb[0].mxu0
  %1227 = vmatprep.mubr.f32.mxu0 0.0
  %1228 = vmatmul.mubr.f32.gmra.mrb[0].mxu0 %v1100
  %v1229 = vpop.f32.mrb[0].mxu0
  %v1230 = vadd.f32 %v1156, %v1229
  %v1231 = vpop.f32.mrb[0].mxu0
  %1232 = vmatprep.mubr.f32.mxu0 0.0
  %1233 = vmatmul.mubr.f32.gmra.mrb[0].mxu0 %v1105
  %v1234 = vpop.f32.mrb[0].mxu0
  %v1235 = vadd.f32 %v1156, %v1234
  %v1236 = vpop.f32.mrb[0].mxu0
  %1237 = vmatprep.mubr.f32.mxu0 0.0
  %1238 = vmatmul.mubr.f32.gmra.mrb[0].mxu0 %v1110
  %v1239 = vpop.f32.mrb[0].mxu0
  %v1240 = vadd.f32 %v1156, %v1239
  %v1241 = vpop.f32.mrb[0].mxu0
  %1242 = vmatprep.mubr.f32.mxu0 0.0
  %1243 = vmatmul.mubr.f32.gmra.mrb[0].mxu0 %v1115
  %v1244 = vpop.f32.mrb[0].mxu0
  %v1245 = vadd.f32 %v1156, %v1244
  %v1246 = vpop.f32.mrb[0].mxu0
  %1247 = vmatprep.mubr.f32.mxu0 0.0
  %1248 = vmatmul.mubr.f32.gmra.mrb[0].mxu0 %v1120
  %v1249 = vpop.f32.mrb[0].mxu0
  %v1250 = vadd.f32 %v1156, %v1249
  %v1251 = vpop.f32.mrb[0].mxu0
  %1252 = vmatprep.mubr.f32.mxu0 0.0
  %1253 = vmatmul.mubr.f32.gmra.mrb[0].mxu0 %v1125
  %v1254 = vpop.f32.mrb[0].mxu0
  %v1255 = vadd.f32 %v1156, %v1254
  %v1256 = vpop.f32.mrb[0].mxu0
  %1257 = vmatprep.mubr.f32.mxu0 0.0
  %1258 = vmatmul.mubr.f32.gmra.mrb[0].mxu0 %v1130
  %v1259 = vpop.f32.mrb[0].mxu0
  %v1260 = vadd.f32 %v1156, %v1259
  %v1261 = vpop.f32.mrb[0].mxu0
  %1262 = vdwg.mxu0
  %v1263 = vlaneseq
  %v1264 = vand.u32 %v1263, 127
  %vm1265 = vcmp.lt.s32.totalorder %v1264, 7
  %v1266 = vsel %vm1265, %v1225, -1e+30
  %v1267 = vsel %vm1265, %v1230, -1e+30
  %v1268 = vsel %vm1265, %v1235, -1e+30
  %v1269 = vsel %vm1265, %v1240, -1e+30
  %v1270 = vsel %vm1265, %v1245, -1e+30
  %v1271 = vsel %vm1265, %v1250, -1e+30
  %v1272 = vsel %vm1265, %v1255, -1e+30
  %v1273 = vsel %vm1265, %v1260, -1e+30
  %1274 = vmax.xlane.f32.xlu0 %v1266
  %v1275 = vpop.xlane.xlu0 %1274
  %1276 = vmax.xlane.f32.xlu0 %v1267
  %v1277 = vpop.xlane.xlu0 %1276
  %1278 = vmax.xlane.f32.xlu0 %v1268
  %v1279 = vpop.xlane.xlu0 %1278
  %1280 = vmax.xlane.f32.xlu0 %v1269
  %v1281 = vpop.xlane.xlu0 %1280
  %1282 = vmax.xlane.f32.xlu0 %v1270
  %v1283 = vpop.xlane.xlu0 %1282
  %1284 = vmax.xlane.f32.xlu0 %v1271
  %v1285 = vpop.xlane.xlu0 %1284
  %1286 = vmax.xlane.f32.xlu0 %v1272
  %v1287 = vpop.xlane.xlu0 %1286
  %1288 = vmax.xlane.f32.xlu0 %v1273
  %v1289 = vpop.xlane.xlu0 %1288
  %v1290 = vsub.f32 %v1266, %v1275
  %v1291 = vsub.f32 %v1267, %v1277
  %v1292 = vsub.f32 %v1268, %v1279
  %v1293 = vsub.f32 %v1269, %v1281
  %v1294 = vsub.f32 %v1270, %v1283
  %v1295 = vsub.f32 %v1271, %v1285
  %v1296 = vsub.f32 %v1272, %v1287
  %v1297 = vsub.f32 %v1273, %v1289
  %v1298 = vmul.f32 %v1290, 1.442695
  %v1299 = vpow.pop %v1298
  %v1300 = vmul.f32 %v1291, 1.442695
  %v1301 = vpow.pop %v1300
  %v1302 = vmul.f32 %v1292, 1.442695
  %v1303 = vpow.pop %v1302
  %v1304 = vmul.f32 %v1293, 1.442695
  %v1305 = vpow.pop %v1304
  %v1306 = vmul.f32 %v1294, 1.442695
  %v1307 = vpow.pop %v1306
  %v1308 = vmul.f32 %v1295, 1.442695
  %v1309 = vpow.pop %v1308
  %v1310 = vmul.f32 %v1296, 1.442695
  %v1311 = vpow.pop %v1310
  %v1312 = vmul.f32 %v1297, 1.442695
  %v1313 = vpow.pop %v1312
  %v1314 = vsel %vm1265, %v1299, 0.0
  %v1315 = vsel %vm1265, %v1301, 0.0
  %v1316 = vsel %vm1265, %v1303, 0.0
  %v1317 = vsel %vm1265, %v1305, 0.0
  %v1318 = vsel %vm1265, %v1307, 0.0
  %v1319 = vsel %vm1265, %v1309, 0.0
  %v1320 = vsel %vm1265, %v1311, 0.0
  %v1321 = vsel %vm1265, %v1313, 0.0
  %1322 = vadd.xlane.f32.xlu0 %v1314
  %v1323 = vpop.xlane.xlu0 %1322
  %1324 = vadd.xlane.f32.xlu0 %v1315
  %v1325 = vpop.xlane.xlu0 %1324
  %1326 = vadd.xlane.f32.xlu0 %v1316
  %v1327 = vpop.xlane.xlu0 %1326
  %1328 = vadd.xlane.f32.xlu0 %v1317
  %v1329 = vpop.xlane.xlu0 %1328
  %1330 = vadd.xlane.f32.xlu0 %v1318
  %v1331 = vpop.xlane.xlu0 %1330
  %1332 = vadd.xlane.f32.xlu0 %v1319
  %v1333 = vpop.xlane.xlu0 %1332
  %1334 = vadd.xlane.f32.xlu0 %v1320
  %v1335 = vpop.xlane.xlu0 %1334
  %1336 = vadd.xlane.f32.xlu0 %v1321
  %v1337 = vpop.xlane.xlu0 %1336
  %v1338 = vlog2.pop %v1323
  %v1339 = vmul.f32 %v1338, 0.6931472
  %v1340 = vlog2.pop %v1325
  %v1341 = vmul.f32 %v1340, 0.6931472
  %v1342 = vlog2.pop %v1327
  %v1343 = vmul.f32 %v1342, 0.6931472
  %v1344 = vlog2.pop %v1329
  %v1345 = vmul.f32 %v1344, 0.6931472
  %v1346 = vlog2.pop %v1331
  %v1347 = vmul.f32 %v1346, 0.6931472
  %v1348 = vlog2.pop %v1333
  %v1349 = vmul.f32 %v1348, 0.6931472
  %v1350 = vlog2.pop %v1335
  %v1351 = vmul.f32 %v1350, 0.6931472
  %v1352 = vlog2.pop %v1337
  %v1353 = vmul.f32 %v1352, 0.6931472
  %v1354 = vsub.f32 %v1290, %v1339
  %v1355 = vsub.f32 %v1291, %v1341
  %v1356 = vsub.f32 %v1292, %v1343
  %v1357 = vsub.f32 %v1293, %v1345
  %v1358 = vsub.f32 %v1294, %v1347
  %v1359 = vsub.f32 %v1295, %v1349
  %v1360 = vsub.f32 %v1296, %v1351
  %v1361 = vsub.f32 %v1297, %v1353
  %1362 = vst [vmem:[%s4] sm:$0xff] %v1354
  %1363 = vst [vmem:[%s4 + $0x8] sm:$0xff] %v1355
  %1364 = vst [vmem:[%s4 + $0x10] sm:$0xff] %v1356
  %1365 = vst [vmem:[%s4 + $0x18] sm:$0xff] %v1357
  %1366 = vst [vmem:[%s4 + $0x20] sm:$0xff] %v1358
  %1367 = vst [vmem:[%s4 + $0x28] sm:$0xff] %v1359
  %1368 = vst [vmem:[%s4 + $0x30] sm:$0xff] %v1360
  %1369 = vst [vmem:[%s4 + $0x38] sm:$0xff] %v1361
  // Predicated region
  $region18: #{sage_forward.1} parent=0 // pred_check
    _
  $region19: #{sage_forward.1} parent=0 // pred_check_branch
    %1371 = sbr.rel (0) target = $region21
  $region20: #{sage_forward.1} parent=0 // pred_region
    _
  $region21: #{sage_forward.1} parent=0 // pred_fallthru
    _
  // Predicated region
  $region22: #{sage_forward.1} parent=0 // pred_check
    _
  $region23: #{sage_forward.1} parent=0 // pred_check_branch
    %1373 = sbr.rel (0) target = $region25
  $region24: #{sage_forward.1} parent=0 // pred_region
    _
  $region25: #{sage_forward.1} parent=0 // pred_fallthru
    _

</llo_original>
